<compile_context>
chip_gen: v5e
topology: v5e:2x2
jax: 0.10.0
libtpu: 0.0.40
codegen_flags: <defaults>
</compile_context>

<pallas_src>
import math
from functools import partial

import jax
import jax.numpy as jnp
from jax.experimental import pallas as pl
from jax.experimental.pallas import tpu as pltpu


LN_EPS = 1e-12


# ----------------------------- config -------------------------------------- #
class Config:
    model = "bert"
    dtype = "float32"
    tune = "prompt"
    pattern = "hybridprompt"      # soft-prompt injection + [MASK] hidden extraction
    prompt_init = 1
    prompt_len = 2
    prompt_num = 2
    prompt_token_ids = 5          # token id that marks a soft-prompt slot
    mask_token_ids = 4            # token id of [MASK]
    h_ids = 2                     # marker head token id (used only by 'marker')
    t_ids = 3                     # marker tail token id
    vocab_size = 50
    hidden = 32
    num_heads = 2
    ffn = 64
    num_layers = 2
    max_seq = 16


# --------------------------- kernel helpers --------------------------------- #
def _layernorm(x, g, b):
    mu = jnp.mean(x, axis=-1, keepdims=True)
    var = jnp.mean((x - mu) ** 2, axis=-1, keepdims=True)
    return (x - mu) * jax.lax.rsqrt(var + LN_EPS) * g + b


def _gelu(x):
    # TODO(synk): HF BERT default is exact erf-GELU; tanh approximation used here.
    return 0.5 * x * (1.0 + jnp.tanh(0.7978845608028654 * (x + 0.044715 * x * x * x)))


# ------------------------------ fused kernel -------------------------------- #
def fused_encoder_kernel(emb_ref, bs_ref, pe_ref, wqkv_ref, wo_ref, w1_ref,
                         w2_ref, sp_ref, out_ref, *, num_heads, num_layers):
    """Embeddings+LN -> num_layers x (MHA + FFN) -> row-select, all in VMEM."""
    BB, S, H = emb_ref.shape
    F = w1_ref.shape[2]
    nh = num_heads
    dh = H // nh
    M = BB * S
    scale = 1.0 / math.sqrt(dh)
    f32, bf16 = jnp.float32, jnp.bfloat16

    # --- embeddings + LayerNorm (f32 elementwise) ----------------------------
    # pe rows: [0:S] position embeddings, [S] token-type-0, [S+1] LN g, [S+2] LN b
    pe = pe_ref[...]
    x = emb_ref[...].astype(f32) + pe[:S][None, :, :] + pe[S]
    x = _layernorm(x, pe[S + 1], pe[S + 2]).reshape(M, H)

    bs = bs_ref[...]                       # (BB, 2, S) packed per-batch vectors
    bias = bs[:, 0:1, :]                   # (BB, 1, S) additive attention bias
    sel = bs[:, 1:2, :]                    # (BB, 1, S) pooling selector

    # packed per-layer f32 params (one (9H+F,) row per layer):
    # [bqkv(3H) | bo(H) | ln1_g(H) | ln1_b(H) | b1(F) | b2(H) | ln2_g(H) | ln2_b(H)]
    o_bqkv, o_bo, o_g1, o_b1 = 0, 3 * H, 4 * H, 5 * H
    o_bf, o_b2, o_g2, o_b2ln = 6 * H, 6 * H + F, 7 * H + F, 8 * H + F

    # L is tiny (2); static unroll is fine.
    # TODO(synk): switch to lax.fori_loop / a layer grid axis if num_layers grows.
    for l in range(num_layers):
        sp = sp_ref[l]                                       # (9H+F,)

        # fused QKV projection (bf16 MXU inputs, f32 accumulate), bf16 cast once
        qkv = jnp.dot(x.astype(bf16), wqkv_ref[l],
                      preferred_element_type=f32) + sp[o_bqkv:o_bqkv + 3 * H]
        qkv = qkv.astype(bf16)
        wo = wo_ref[l]                                       # (H, H) bf16

        # per-head attention; fold each head's output projection in and
        # accumulate, so no head-stack or ctx-reassembly concats are needed.
        attn = jnp.zeros((M, H), f32)
        for h in range(nh):
            qh = qkv[:, h * dh:(h + 1) * dh].reshape(BB, S, dh)
            kh = qkv[:, H + h * dh:H + (h + 1) * dh].reshape(BB, S, dh)
            vh = qkv[:, 2 * H + h * dh:2 * H + (h + 1) * dh].reshape(BB, S, dh)

            s = jnp.einsum("bqd,bkd->bqk", qh, kh,
                           preferred_element_type=f32) * scale + bias
            s = s - jnp.max(s, axis=-1, keepdims=True)
            p = jnp.exp(s)
            p = p * pl.reciprocal(jnp.sum(p, axis=-1, keepdims=True), approx=True)
            ctx = jnp.einsum("bqk,bkd->bqd", p.astype(bf16), vh,
                             preferred_element_type=f32)     # (BB, S, dh)
            attn = attn + jnp.dot(ctx.reshape(M, dh).astype(bf16),
                                  wo[h * dh:(h + 1) * dh, :],
                                  preferred_element_type=f32)

        attn = attn + sp[o_bo:o_bo + H]
        x1 = _layernorm(x + attn, sp[o_g1:o_g1 + H], sp[o_b1:o_b1 + H])

        # FFN
        hmid = _gelu(jnp.dot(x1.astype(bf16), w1_ref[l],
                             preferred_element_type=f32) + sp[o_bf:o_bf + F])
        ffn = jnp.dot(hmid.astype(bf16), w2_ref[l],
                      preferred_element_type=f32) + sp[o_b2:o_b2 + H]
        x = _layernorm(x1 + ffn, sp[o_g2:o_g2 + H], sp[o_b2ln:o_b2ln + H])

    # --- fused row selection / mean: out[b] = sel[b] @ x[b] -------------------
    xb = x.reshape(BB, S, H)
    out = jnp.einsum("bqs,bsh->bqh", sel, xb, preferred_element_type=f32)
    out_ref[...] = out.reshape(BB, H).astype(out_ref.dtype)  # lane-dense 2-D store


# ---------------------------- pallas wrapper --------------------------------- #
def _pick_batch_block(B, S):
    """Largest divisor of B with BB*S <= 512 rows.  No forced multi-step grid:
    one big block beats several tiny steps on single-TC chips (v5e/v6e) and at
    toy per-step work on v7x.  When BB < B, require BB % 8 == 0 so the 2-D
    (BB, H) output block satisfies the (8,128) tiling rule."""
    cap = max(1, 512 // S)
    good = [bb for bb in range(1, B + 1)
            if B % bb == 0 and bb <= cap and (bb == B or bb % 8 == 0)]
    return max(good) if good else B


def fused_forward(emb, mask, sel, params, num_heads, num_layers):
    B, S, H = emb.shape
    L = num_layers
    F = params["w1"].shape[-1]
    W = params["sp"].shape[-1]
    BB = _pick_batch_block(B, S)
    grid = (pl.cdiv(B, BB),)

    # pack the two per-batch (B, S) vectors into one input
    bias = (1.0 - mask.astype(jnp.float32)) * -10000.0               # (B, S)
    bs = jnp.stack([bias, sel.astype(jnp.float32)], axis=1)          # (B, 2, S)
    # pack position embeddings + embedding-LN params into one input
    pe = jnp.concatenate([params["pos_emb"][:S], params["embp"]], axis=0)  # (S+3, H)

    # replicated / constant-index blocks: single-buffered (never re-fetched)
    def rep2(shape):
        return pl.BlockSpec(shape, lambda b: (0, 0), pipeline_mode=pl.Buffered(1))

    def rep3(shape):
        return pl.BlockSpec(shape, lambda b: (0, 0, 0), pipeline_mode=pl.Buffered(1))

    out = pl.pallas_call(
        partial(fused_encoder_kernel, num_heads=num_heads, num_layers=num_layers),
        out_shape=jax.ShapeDtypeStruct((B, H), jnp.float32),
        grid=grid,
        in_specs=[
            pl.BlockSpec((BB, S, H), lambda b: (b, 0, 0)),   # input embeddings
            pl.BlockSpec((BB, 2, S), lambda b: (b, 0, 0)),   # packed bias + selector
            rep2((S + 3, H)),                                # pos emb + emb LN params
            rep3((L, H, 3 * H)),                             # wqkv (bf16)
            rep3((L, H, H)),                                 # wo   (bf16)
            rep3((L, H, F)),                                 # w1   (bf16)
            rep3((L, F, H)),                                 # w2   (bf16)
            rep2((L, W)),                                    # packed per-layer biases/LN
        ],
        out_specs=pl.BlockSpec((BB, H), lambda b: (b, 0)),
        compiler_params=pltpu.CompilerParams(dimension_semantics=("parallel",)),
    )(emb, bs, pe, params["wqkv"], params["wo"], params["w1"], params["w2"],
      params["sp"])
    return out


# ------------------------------ model --------------------------------------- #
class EncodingModelPallas:
    """JAX/Pallas re-implementation of EncodingModel.forward."""

    def __init__(self, config, key):
        self.config = config
        H, F, L = config.hidden, config.ffn, config.num_layers
        std = 0.02
        keys = jax.random.split(key, 4 + 6 * L)
        ki = 0

        # "BERT" embeddings (deterministic synthetic init)
        self.word_emb = jax.random.normal(keys[ki], (config.vocab_size, H), jnp.float32) * std; ki += 1
        pos_emb = jax.random.normal(keys[ki], (config.max_seq, H), jnp.float32) * std; ki += 1
        tok_type_emb = jax.random.normal(keys[ki], (2, H), jnp.float32) * std; ki += 1
        self.embedding_dim = H

        # packed embedding params: [token-type row 0, emb LN gamma, emb LN beta]
        # (reference forward never passes token_type_ids => HF defaults to zeros)
        embp = jnp.stack([tok_type_emb[0],
                          jnp.ones((H,), jnp.float32),
                          jnp.zeros((H,), jnp.float32)], axis=0)

        # transformer layers: stacked weights with a leading L dim
        wqkv, wo, w1, w2 = [], [], [], []
        for _ in range(L):
            wq = jax.random.normal(keys[ki], (H, H), jnp.float32) * std; ki += 1
            wk = jax.random.normal(keys[ki], (H, H), jnp.float32) * std; ki += 1
            wv = jax.random.normal(keys[ki], (H, H), jnp.float32) * std; ki += 1
            wo.append(jax.random.normal(keys[ki], (H, H), jnp.float32) * std); ki += 1
            w1.append(jax.random.normal(keys[ki], (H, F), jnp.float32) * std); ki += 1
            w2.append(jax.random.normal(keys[ki], (F, H), jnp.float32) * std); ki += 1
            wqkv.append(jnp.concatenate([wq, wk, wv], axis=1))     # (H, 3H)

        # packed per-layer small f32 params (matches kernel offsets):
        # [bqkv(3H) | bo(H) | ln1_g(H) | ln1_b(H) | b1(F) | b2(H) | ln2_g(H) | ln2_b(H)]
        sp_row = jnp.concatenate([
            jnp.zeros((3 * H,)), jnp.zeros((H,)), jnp.ones((H,)), jnp.zeros((H,)),
            jnp.zeros((F,)), jnp.zeros((H,)), jnp.ones((H,)), jnp.zeros((H,)),
        ]).astype(jnp.float32)

        self.params = {
            "pos_emb": pos_emb,
            "embp": embp,
            # matmul weights stored bf16 (MXU-friendly); elementwise math stays f32
            "wqkv": jnp.stack(wqkv).astype(jnp.bfloat16),          # (L, H, 3H)
            "wo":   jnp.stack(wo).astype(jnp.bfloat16),            # (L, H, H)
            "w1":   jnp.stack(w1).astype(jnp.bfloat16),            # (L, H, F)
            "w2":   jnp.stack(w2).astype(jnp.bfloat16),            # (L, F, H)
            "sp":   jnp.tile(sp_row[None, :], (L, 1)),             # (L, 9H+F)
        }

        # soft-prompt embedding + _init_prompt (prompt_init == 1):
        # every prompt row is a copy of one word embedding row (stand-in for id 2003).
        self.prompt_lens = config.prompt_len * config.prompt_num
        token_embedding = self.word_emb[3]
        self.softprompt = jnp.tile(token_embedding[None, :], (self.prompt_lens, 1))
        self.prompt_ids = jnp.arange(self.prompt_lens, dtype=jnp.int32)

        # info_nce_fc (not used in forward, kept for parameter parity)
        self.nce_w = jax.random.normal(keys[ki], (H, H), jnp.float32) * std; ki += 1
        self.nce_b = jnp.zeros((H,), jnp.float32)

    # --- embedding_input: replace prompt-slot tokens by soft-prompt rows ----- #
    def embedding_input(self, input_ids):
        inp = self.word_emb[input_ids]                               # (B,S,H)
        is_p = (input_ids == self.config.prompt_token_ids)           # (B,S)
        p_idx = jnp.cumsum(is_p.astype(jnp.int32), axis=1) - 1       # running prompt index
        p_idx = jnp.clip(p_idx, 0, self.prompt_lens - 1)
        prompt_rows = self.softprompt[p_idx]                          # (B,S,H)
        return jnp.where(is_p[..., None], prompt_rows, inp)

    # --- forward -------------------------------------------------------------- #
    def forward(self, inputs, is_des=False):
        ids, mask = inputs["ids"], inputs["mask"]
        B, S = ids.shape
        pattern = self.config.pattern

        if pattern in ("softprompt", "hybridprompt"):
            emb = self.embedding_input(ids)
        else:
            emb = self.word_emb[ids]

        # build the row selector (one-hot / mean weights) on-device; argmax of a
        # boolean gives the first match or 0 when absent — same as the reference's
        # np.argwhere(...)[0][0] with try/except-0 fallback, without host sync.
        if pattern in ("cls", "softprompt"):
            sel = jax.nn.one_hot(jnp.zeros((B,), jnp.int32), S, dtype=jnp.float32)
        elif pattern in ("hardprompt", "hybridprompt"):
            if is_des:
                # reference uses torch.mean over ALL positions (padding included)
                sel = jnp.full((B, S), 1.0 / S, dtype=jnp.float32)
            else:
                pos = jnp.argmax(ids == self.config.mask_token_ids, axis=1)
                sel = jax.nn.one_hot(pos, S, dtype=jnp.float32)
        elif pattern == "marker":
            hpos = jnp.argmax(ids == self.config.h_ids, axis=1)
            tpos = jnp.argmax(ids == self.config.t_ids, axis=1)
            sel = 0.5 * (jax.nn.one_hot(hpos, S, dtype=jnp.float32)
                         + jax.nn.one_hot(tpos, S, dtype=jnp.float32))
        else:
            raise ValueError(f"unknown pattern {pattern}")

        return fused_forward(emb, mask, sel, self.params,
                             self.config.num_heads, self.config.num_layers)


# ------------------------------- main ---------------------------------------- #
if __name__ == "__main__":
    cfg = Config()
    model = EncodingModelPallas(cfg, jax.random.PRNGKey(0))

    B, S = 2, cfg.max_seq
    ids = jax.random.randint(jax.random.PRNGKey(1), (B, S), 6, cfg.vocab_size, dtype=jnp.int32)
    ids = ids.at[:, 0].set(1)                         # [CLS]-like token
    ids = ids.at[:, 1:1 + cfg.prompt_len * cfg.prompt_num].set(cfg.prompt_token_ids)
    ids = ids.at[0, 7].set(cfg.mask_token_ids)        # [MASK] in example 0
    ids = ids.at[1, 9].set(cfg.mask_token_ids)        # [MASK] in example 1
    mask = jnp.ones((B, S), dtype=jnp.int32)
    mask = mask.at[1, 12:].set(0)                     # padding on example 1

    inputs = {"ids": ids, "mask": mask}
    out = model.forward(inputs, is_des=False)
    out = jax.block_until_ready(out)

    assert out.shape == (B, cfg.hidden), out.shape
    assert bool(jnp.all(jnp.isfinite(out)))
    print("KERNEL_OK")
</pallas_src>

<mosaic_0001>
module attributes {stable_mosaic.version = 11 : i64} {
  func.func @fused_encoder_kernel(%arg0: i32, %arg1: memref<2x16x32xf32, #tpu.memory_space<vmem>>, %arg2: memref<2x2x16xf32, #tpu.memory_space<vmem>>, %arg3: memref<19x32xf32, #tpu.memory_space<vmem>>, %arg4: memref<2x32x96xbf16, #tpu.memory_space<vmem>>, %arg5: memref<2x32x32xbf16, #tpu.memory_space<vmem>>, %arg6: memref<2x32x64xbf16, #tpu.memory_space<vmem>>, %arg7: memref<2x64x32xbf16, #tpu.memory_space<vmem>>, %arg8: memref<2x352xf32, #tpu.memory_space<vmem>>, %arg9: memref<2x32xf32, #tpu.memory_space<vmem>>) attributes {dimension_semantics = [#tpu.dimension_semantics<parallel>], iteration_bounds = array<i64: 1>, scalar_prefetch = 0 : i64, scratch_operands = 0 : i64, tpu.core_type = #tpu.core_type<tc>, window_params = [{transform_indices = @transform_0, window_bounds = array<i64: 2, 16, 32>}, {transform_indices = @transform_1, window_bounds = array<i64: 2, 2, 16>}, {pipeline_mode = #tpu.pipeline_mode<synchronous>, transform_indices = @transform_2, window_bounds = array<i64: 19, 32>}, {pipeline_mode = #tpu.pipeline_mode<synchronous>, transform_indices = @transform_3, window_bounds = array<i64: 2, 32, 96>}, {pipeline_mode = #tpu.pipeline_mode<synchronous>, transform_indices = @transform_4, window_bounds = array<i64: 2, 32, 32>}, {pipeline_mode = #tpu.pipeline_mode<synchronous>, transform_indices = @transform_5, window_bounds = array<i64: 2, 32, 64>}, {pipeline_mode = #tpu.pipeline_mode<synchronous>, transform_indices = @transform_6, window_bounds = array<i64: 2, 64, 32>}, {pipeline_mode = #tpu.pipeline_mode<synchronous>, transform_indices = @transform_7, window_bounds = array<i64: 2, 352>}, {transform_indices = @transform_8, window_bounds = array<i64: 2, 32>}]} {
    %c0 = arith.constant 0 : index
    %c0_0 = arith.constant 0 : index
    %0 = vector.load %arg3[%c0, %c0_0] : memref<19x32xf32, #tpu.memory_space<vmem>>, vector<19x32xf32>
    %c0_1 = arith.constant 0 : index
    %c0_2 = arith.constant 0 : index
    %c0_3 = arith.constant 0 : index
    %1 = vector.load %arg1[%c0_1, %c0_2, %c0_3] : memref<2x16x32xf32, #tpu.memory_space<vmem>>, vector<2x16x32xf32>
    %2 = vector.extract_strided_slice %0 {offsets = [0, 0], sizes = [16, 32], strides = [1, 1]} : vector<19x32xf32> to vector<16x32xf32>
    %3 = vector.shape_cast %2 : vector<16x32xf32> to vector<1x16x32xf32>
    %4 = vector.broadcast %3 : vector<1x16x32xf32> to vector<2x16x32xf32>
    %5 = arith.addf %1, %4 : vector<2x16x32xf32>
    %6 = vector.extract_strided_slice %0 {offsets = [16, 0], sizes = [1, 32], strides = [1, 1]} : vector<19x32xf32> to vector<1x32xf32>
    %7 = vector.shape_cast %6 : vector<1x32xf32> to vector<32xf32>
    %8 = vector.shape_cast %7 : vector<32xf32> to vector<1x1x32xf32>
    %9 = vector.broadcast %8 : vector<1x1x32xf32> to vector<2x16x32xf32>
    %10 = arith.addf %5, %9 : vector<2x16x32xf32>
    %11 = vector.extract_strided_slice %0 {offsets = [17, 0], sizes = [1, 32], strides = [1, 1]} : vector<19x32xf32> to vector<1x32xf32>
    %12 = vector.shape_cast %11 : vector<1x32xf32> to vector<32xf32>
    %13 = vector.extract_strided_slice %0 {offsets = [18, 0], sizes = [1, 32], strides = [1, 1]} : vector<19x32xf32> to vector<1x32xf32>
    %14 = vector.shape_cast %13 : vector<1x32xf32> to vector<32xf32>
    %cst = arith.constant dense<0.000000e+00> : vector<2x16xf32>
    %15 = vector.multi_reduction <add>, %10, %cst [2] : vector<2x16x32xf32> to vector<2x16xf32>
    %16 = vector.shape_cast %15 : vector<2x16xf32> to vector<2x16x1xf32>
    %cst_4 = arith.constant 3.200000e+01 : f32
    %17 = vector.broadcast %cst_4 : f32 to vector<2x16x1xf32>
    %18 = arith.divf %16, %17 : vector<2x16x1xf32>
    %19 = vector.broadcast %18 : vector<2x16x1xf32> to vector<2x16x32xf32>
    %20 = arith.subf %10, %19 : vector<2x16x32xf32>
    %21 = arith.mulf %20, %20 : vector<2x16x32xf32>
    %cst_5 = arith.constant dense<0.000000e+00> : vector<2x16xf32>
    %22 = vector.multi_reduction <add>, %21, %cst_5 [2] : vector<2x16x32xf32> to vector<2x16xf32>
    %23 = vector.shape_cast %22 : vector<2x16xf32> to vector<2x16x1xf32>
    %cst_6 = arith.constant 3.200000e+01 : f32
    %24 = vector.broadcast %cst_6 : f32 to vector<2x16x1xf32>
    %25 = arith.divf %23, %24 : vector<2x16x1xf32>
    %26 = vector.broadcast %18 : vector<2x16x1xf32> to vector<2x16x32xf32>
    %27 = arith.subf %10, %26 : vector<2x16x32xf32>
    %cst_7 = arith.constant 9.99999996E-13 : f32
    %28 = vector.broadcast %cst_7 : f32 to vector<2x16x1xf32>
    %29 = arith.addf %25, %28 : vector<2x16x1xf32>
    %30 = math.rsqrt %29 : vector<2x16x1xf32>
    %31 = vector.broadcast %30 : vector<2x16x1xf32> to vector<2x16x32xf32>
    %32 = arith.mulf %27, %31 : vector<2x16x32xf32>
    %33 = vector.shape_cast %12 : vector<32xf32> to vector<1x1x32xf32>
    %34 = vector.broadcast %33 : vector<1x1x32xf32> to vector<2x16x32xf32>
    %35 = arith.mulf %32, %34 : vector<2x16x32xf32>
    %36 = vector.shape_cast %14 : vector<32xf32> to vector<1x1x32xf32>
    %37 = vector.broadcast %36 : vector<1x1x32xf32> to vector<2x16x32xf32>
    %38 = arith.addf %35, %37 : vector<2x16x32xf32>
    %39 = vector.shape_cast %38 : vector<2x16x32xf32> to vector<32x32xf32>
    %c0_8 = arith.constant 0 : index
    %c0_9 = arith.constant 0 : index
    %c0_10 = arith.constant 0 : index
    %40 = vector.load %arg2[%c0_8, %c0_9, %c0_10] : memref<2x2x16xf32, #tpu.memory_space<vmem>>, vector<2x2x16xf32>
    %41 = vector.extract_strided_slice %40 {offsets = [0, 0, 0], sizes = [2, 1, 16], strides = [1, 1, 1]} : vector<2x2x16xf32> to vector<2x1x16xf32>
    %42 = vector.extract_strided_slice %40 {offsets = [0, 1, 0], sizes = [2, 1, 16], strides = [1, 1, 1]} : vector<2x2x16xf32> to vector<2x1x16xf32>
    %c0_11 = arith.constant 0 : index
    %c0_12 = arith.constant 0 : index
    %43 = vector.load %arg8[%c0_11, %c0_12] : memref<2x352xf32, #tpu.memory_space<vmem>>, vector<1x352xf32>
    %44 = vector.shape_cast %43 : vector<1x352xf32> to vector<352xf32>
    %45 = arith.truncf %39 : vector<32x32xf32> to vector<32x32xbf16>
    %c0_13 = arith.constant 0 : index
    %c0_14 = arith.constant 0 : index
    %c0_15 = arith.constant 0 : index
    %46 = vector.load %arg4[%c0_13, %c0_14, %c0_15] : memref<2x32x96xbf16, #tpu.memory_space<vmem>>, vector<1x32x96xbf16>
    %47 = vector.shape_cast %46 : vector<1x32x96xbf16> to vector<32x96xbf16>
    %cst_16 = arith.constant dense<0.000000e+00> : vector<32x96xf32>
    %48 = tpu.matmul %45, %47, %cst_16 {dimension_numbers = #tpu.dot_dimension_numbers<[1], [0], [0], [1], [0, 0, 1, 1], [], []>} : vector<32x32xbf16>, vector<32x96xbf16>, vector<32x96xf32> -> vector<32x96xf32>
    %49 = vector.extract_strided_slice %44 {offsets = [0], sizes = [96], strides = [1]} : vector<352xf32> to vector<96xf32>
    %50 = vector.shape_cast %49 : vector<96xf32> to vector<1x96xf32>
    %51 = vector.broadcast %50 : vector<1x96xf32> to vector<32x96xf32>
    %52 = arith.addf %48, %51 : vector<32x96xf32>
    %53 = arith.truncf %52 : vector<32x96xf32> to vector<32x96xbf16>
    %c0_17 = arith.constant 0 : index
    %c0_18 = arith.constant 0 : index
    %c0_19 = arith.constant 0 : index
    %54 = vector.load %arg5[%c0_17, %c0_18, %c0_19] : memref<2x32x32xbf16, #tpu.memory_space<vmem>>, vector<1x32x32xbf16>
    %55 = vector.shape_cast %54 : vector<1x32x32xbf16> to vector<32x32xbf16>
    %cst_20 = arith.constant 0.000000e+00 : f32
    %56 = vector.broadcast %cst_20 : f32 to vector<32x32xf32>
    %57 = vector.extract_strided_slice %53 {offsets = [0, 0], sizes = [32, 16], strides = [1, 1]} : vector<32x96xbf16> to vector<32x16xbf16>
    %58 = vector.shape_cast %57 : vector<32x16xbf16> to vector<2x16x16xbf16>
    %59 = vector.extract_strided_slice %53 {offsets = [0, 32], sizes = [32, 16], strides = [1, 1]} : vector<32x96xbf16> to vector<32x16xbf16>
    %60 = vector.shape_cast %59 : vector<32x16xbf16> to vector<2x16x16xbf16>
    %61 = vector.extract_strided_slice %53 {offsets = [0, 64], sizes = [32, 16], strides = [1, 1]} : vector<32x96xbf16> to vector<32x16xbf16>
    %62 = vector.shape_cast %61 : vector<32x16xbf16> to vector<2x16x16xbf16>
    "tpu.trace_start"() <{level = 10 : i32, message = "bqd,bkd->bqk"}> : () -> ()
    %cst_21 = arith.constant dense<0.000000e+00> : vector<2x16x16xf32>
    %63 = tpu.matmul %58, %60, %cst_21 {dimension_numbers = #tpu.dot_dimension_numbers<[2], [2], [1], [1], [0, 0, 0, 1, 1, 1], [0], [0]>} : vector<2x16x16xbf16>, vector<2x16x16xbf16>, vector<2x16x16xf32> -> vector<2x16x16xf32>
    "tpu.trace_stop"() : () -> ()
    %cst_22 = arith.constant 2.500000e-01 : f32
    %64 = vector.broadcast %cst_22 : f32 to vector<2x16x16xf32>
    %65 = arith.mulf %63, %64 : vector<2x16x16xf32>
    %66 = vector.broadcast %41 : vector<2x1x16xf32> to vector<2x16x16xf32>
    %67 = arith.addf %65, %66 : vector<2x16x16xf32>
    %cst_23 = arith.constant dense<0xFF800000> : vector<2x16xf32>
    %68 = vector.multi_reduction <maximumf>, %67, %cst_23 [2] : vector<2x16x16xf32> to vector<2x16xf32>
    %69 = vector.shape_cast %68 : vector<2x16xf32> to vector<2x16x1xf32>
    %70 = vector.broadcast %69 : vector<2x16x1xf32> to vector<2x16x16xf32>
    %71 = arith.subf %67, %70 : vector<2x16x16xf32>
    %72 = math.exp %71 : vector<2x16x16xf32>
    %cst_24 = arith.constant dense<0.000000e+00> : vector<2x16xf32>
    %73 = vector.multi_reduction <add>, %72, %cst_24 [2] : vector<2x16x16xf32> to vector<2x16xf32>
    %74 = vector.shape_cast %73 : vector<2x16xf32> to vector<2x16x1xf32>
    %75 = tpu.reciprocal %74 {approx = true} : vector<2x16x1xf32> -> vector<2x16x1xf32>
    %76 = vector.broadcast %75 : vector<2x16x1xf32> to vector<2x16x16xf32>
    %77 = arith.mulf %72, %76 : vector<2x16x16xf32>
    %78 = arith.truncf %77 : vector<2x16x16xf32> to vector<2x16x16xbf16>
    "tpu.trace_start"() <{level = 10 : i32, message = "bqk,bkd->bqd"}> : () -> ()
    %cst_25 = arith.constant dense<0.000000e+00> : vector<2x16x16xf32>
    %79 = tpu.matmul %78, %62, %cst_25 {dimension_numbers = #tpu.dot_dimension_numbers<[2], [1], [1], [2], [0, 0, 0, 1, 1, 2], [0], [0]>} : vector<2x16x16xbf16>, vector<2x16x16xbf16>, vector<2x16x16xf32> -> vector<2x16x16xf32>
    "tpu.trace_stop"() : () -> ()
    %80 = vector.shape_cast %79 : vector<2x16x16xf32> to vector<32x16xf32>
    %81 = arith.truncf %80 : vector<32x16xf32> to vector<32x16xbf16>
    %82 = vector.extract_strided_slice %55 {offsets = [0, 0], sizes = [16, 32], strides = [1, 1]} : vector<32x32xbf16> to vector<16x32xbf16>
    %cst_26 = arith.constant dense<0.000000e+00> : vector<32x32xf32>
    %83 = tpu.matmul %81, %82, %cst_26 {dimension_numbers = #tpu.dot_dimension_numbers<[1], [0], [0], [1], [0, 0, 1, 1], [], []>} : vector<32x16xbf16>, vector<16x32xbf16>, vector<32x32xf32> -> vector<32x32xf32>
    %84 = arith.addf %56, %83 : vector<32x32xf32>
    %85 = vector.extract_strided_slice %53 {offsets = [0, 16], sizes = [32, 16], strides = [1, 1]} : vector<32x96xbf16> to vector<32x16xbf16>
    %86 = vector.shape_cast %85 : vector<32x16xbf16> to vector<2x16x16xbf16>
    %87 = vector.extract_strided_slice %53 {offsets = [0, 48], sizes = [32, 16], strides = [1, 1]} : vector<32x96xbf16> to vector<32x16xbf16>
    %88 = vector.shape_cast %87 : vector<32x16xbf16> to vector<2x16x16xbf16>
    %89 = vector.extract_strided_slice %53 {offsets = [0, 80], sizes = [32, 16], strides = [1, 1]} : vector<32x96xbf16> to vector<32x16xbf16>
    %90 = vector.shape_cast %89 : vector<32x16xbf16> to vector<2x16x16xbf16>
    "tpu.trace_start"() <{level = 10 : i32, message = "bqd,bkd->bqk"}> : () -> ()
    %cst_27 = arith.constant dense<0.000000e+00> : vector<2x16x16xf32>
    %91 = tpu.matmul %86, %88, %cst_27 {dimension_numbers = #tpu.dot_dimension_numbers<[2], [2], [1], [1], [0, 0, 0, 1, 1, 1], [0], [0]>} : vector<2x16x16xbf16>, vector<2x16x16xbf16>, vector<2x16x16xf32> -> vector<2x16x16xf32>
    "tpu.trace_stop"() : () -> ()
    %cst_28 = arith.constant 2.500000e-01 : f32
    %92 = vector.broadcast %cst_28 : f32 to vector<2x16x16xf32>
    %93 = arith.mulf %91, %92 : vector<2x16x16xf32>
    %94 = vector.broadcast %41 : vector<2x1x16xf32> to vector<2x16x16xf32>
    %95 = arith.addf %93, %94 : vector<2x16x16xf32>
    %cst_29 = arith.constant dense<0xFF800000> : vector<2x16xf32>
    %96 = vector.multi_reduction <maximumf>, %95, %cst_29 [2] : vector<2x16x16xf32> to vector<2x16xf32>
    %97 = vector.shape_cast %96 : vector<2x16xf32> to vector<2x16x1xf32>
    %98 = vector.broadcast %97 : vector<2x16x1xf32> to vector<2x16x16xf32>
    %99 = arith.subf %95, %98 : vector<2x16x16xf32>
    %100 = math.exp %99 : vector<2x16x16xf32>
    %cst_30 = arith.constant dense<0.000000e+00> : vector<2x16xf32>
    %101 = vector.multi_reduction <add>, %100, %cst_30 [2] : vector<2x16x16xf32> to vector<2x16xf32>
    %102 = vector.shape_cast %101 : vector<2x16xf32> to vector<2x16x1xf32>
    %103 = tpu.reciprocal %102 {approx = true} : vector<2x16x1xf32> -> vector<2x16x1xf32>
    %104 = vector.broadcast %103 : vector<2x16x1xf32> to vector<2x16x16xf32>
    %105 = arith.mulf %100, %104 : vector<2x16x16xf32>
    %106 = arith.truncf %105 : vector<2x16x16xf32> to vector<2x16x16xbf16>
    "tpu.trace_start"() <{level = 10 : i32, message = "bqk,bkd->bqd"}> : () -> ()
    %cst_31 = arith.constant dense<0.000000e+00> : vector<2x16x16xf32>
    %107 = tpu.matmul %106, %90, %cst_31 {dimension_numbers = #tpu.dot_dimension_numbers<[2], [1], [1], [2], [0, 0, 0, 1, 1, 2], [0], [0]>} : vector<2x16x16xbf16>, vector<2x16x16xbf16>, vector<2x16x16xf32> -> vector<2x16x16xf32>
    "tpu.trace_stop"() : () -> ()
    %108 = vector.shape_cast %107 : vector<2x16x16xf32> to vector<32x16xf32>
    %109 = arith.truncf %108 : vector<32x16xf32> to vector<32x16xbf16>
    %110 = vector.extract_strided_slice %55 {offsets = [16, 0], sizes = [16, 32], strides = [1, 1]} : vector<32x32xbf16> to vector<16x32xbf16>
    %cst_32 = arith.constant dense<0.000000e+00> : vector<32x32xf32>
    %111 = tpu.matmul %109, %110, %cst_32 {dimension_numbers = #tpu.dot_dimension_numbers<[1], [0], [0], [1], [0, 0, 1, 1], [], []>} : vector<32x16xbf16>, vector<16x32xbf16>, vector<32x32xf32> -> vector<32x32xf32>
    %112 = arith.addf %84, %111 : vector<32x32xf32>
    %113 = vector.extract_strided_slice %44 {offsets = [96], sizes = [32], strides = [1]} : vector<352xf32> to vector<32xf32>
    %114 = vector.shape_cast %113 : vector<32xf32> to vector<1x32xf32>
    %115 = vector.broadcast %114 : vector<1x32xf32> to vector<32x32xf32>
    %116 = arith.addf %112, %115 : vector<32x32xf32>
    %117 = arith.addf %39, %116 : vector<32x32xf32>
    %118 = vector.extract_strided_slice %44 {offsets = [128], sizes = [32], strides = [1]} : vector<352xf32> to vector<32xf32>
    %119 = vector.extract_strided_slice %44 {offsets = [160], sizes = [32], strides = [1]} : vector<352xf32> to vector<32xf32>
    %cst_33 = arith.constant dense<0.000000e+00> : vector<32xf32>
    %120 = vector.multi_reduction <add>, %117, %cst_33 [1] : vector<32x32xf32> to vector<32xf32>
    %121 = vector.shape_cast %120 : vector<32xf32> to vector<32x1xf32>
    %cst_34 = arith.constant 3.200000e+01 : f32
    %122 = vector.broadcast %cst_34 : f32 to vector<32x1xf32>
    %123 = arith.divf %121, %122 : vector<32x1xf32>
    %124 = vector.broadcast %123 : vector<32x1xf32> to vector<32x32xf32>
    %125 = arith.subf %117, %124 : vector<32x32xf32>
    %126 = arith.mulf %125, %125 : vector<32x32xf32>
    %cst_35 = arith.constant dense<0.000000e+00> : vector<32xf32>
    %127 = vector.multi_reduction <add>, %126, %cst_35 [1] : vector<32x32xf32> to vector<32xf32>
    %128 = vector.shape_cast %127 : vector<32xf32> to vector<32x1xf32>
    %cst_36 = arith.constant 3.200000e+01 : f32
    %129 = vector.broadcast %cst_36 : f32 to vector<32x1xf32>
    %130 = arith.divf %128, %129 : vector<32x1xf32>
    %131 = vector.broadcast %123 : vector<32x1xf32> to vector<32x32xf32>
    %132 = arith.subf %117, %131 : vector<32x32xf32>
    %cst_37 = arith.constant 9.99999996E-13 : f32
    %133 = vector.broadcast %cst_37 : f32 to vector<32x1xf32>
    %134 = arith.addf %130, %133 : vector<32x1xf32>
    %135 = math.rsqrt %134 : vector<32x1xf32>
    %136 = vector.broadcast %135 : vector<32x1xf32> to vector<32x32xf32>
    %137 = arith.mulf %132, %136 : vector<32x32xf32>
    %138 = vector.shape_cast %118 : vector<32xf32> to vector<1x32xf32>
    %139 = vector.broadcast %138 : vector<1x32xf32> to vector<32x32xf32>
    %140 = arith.mulf %137, %139 : vector<32x32xf32>
    %141 = vector.shape_cast %119 : vector<32xf32> to vector<1x32xf32>
    %142 = vector.broadcast %141 : vector<1x32xf32> to vector<32x32xf32>
    %143 = arith.addf %140, %142 : vector<32x32xf32>
    %144 = arith.truncf %143 : vector<32x32xf32> to vector<32x32xbf16>
    %c0_38 = arith.constant 0 : index
    %c0_39 = arith.constant 0 : index
    %c0_40 = arith.constant 0 : index
    %145 = vector.load %arg6[%c0_38, %c0_39, %c0_40] : memref<2x32x64xbf16, #tpu.memory_space<vmem>>, vector<1x32x64xbf16>
    %146 = vector.shape_cast %145 : vector<1x32x64xbf16> to vector<32x64xbf16>
    %cst_41 = arith.constant dense<0.000000e+00> : vector<32x64xf32>
    %147 = tpu.matmul %144, %146, %cst_41 {dimension_numbers = #tpu.dot_dimension_numbers<[1], [0], [0], [1], [0, 0, 1, 1], [], []>} : vector<32x32xbf16>, vector<32x64xbf16>, vector<32x64xf32> -> vector<32x64xf32>
    %148 = vector.extract_strided_slice %44 {offsets = [192], sizes = [64], strides = [1]} : vector<352xf32> to vector<64xf32>
    %149 = vector.shape_cast %148 : vector<64xf32> to vector<1x64xf32>
    %150 = vector.broadcast %149 : vector<1x64xf32> to vector<32x64xf32>
    %151 = arith.addf %147, %150 : vector<32x64xf32>
    %cst_42 = arith.constant 5.000000e-01 : f32
    %152 = vector.broadcast %cst_42 : f32 to vector<32x64xf32>
    %153 = arith.mulf %152, %151 : vector<32x64xf32>
    %cst_43 = arith.constant 4.471500e-02 : f32
    %154 = vector.broadcast %cst_43 : f32 to vector<32x64xf32>
    %155 = arith.mulf %154, %151 : vector<32x64xf32>
    %156 = arith.mulf %155, %151 : vector<32x64xf32>
    %157 = arith.mulf %156, %151 : vector<32x64xf32>
    %158 = arith.addf %151, %157 : vector<32x64xf32>
    %cst_44 = arith.constant 0.797884583 : f32
    %159 = vector.broadcast %cst_44 : f32 to vector<32x64xf32>
    %160 = arith.mulf %159, %158 : vector<32x64xf32>
    %161 = math.tanh %160 : vector<32x64xf32>
    %cst_45 = arith.constant 1.000000e+00 : f32
    %162 = vector.broadcast %cst_45 : f32 to vector<32x64xf32>
    %163 = arith.addf %162, %161 : vector<32x64xf32>
    %164 = arith.mulf %153, %163 : vector<32x64xf32>
    %165 = arith.truncf %164 : vector<32x64xf32> to vector<32x64xbf16>
    %c0_46 = arith.constant 0 : index
    %c0_47 = arith.constant 0 : index
    %c0_48 = arith.constant 0 : index
    %166 = vector.load %arg7[%c0_46, %c0_47, %c0_48] : memref<2x64x32xbf16, #tpu.memory_space<vmem>>, vector<1x64x32xbf16>
    %167 = vector.shape_cast %166 : vector<1x64x32xbf16> to vector<64x32xbf16>
    %cst_49 = arith.constant dense<0.000000e+00> : vector<32x32xf32>
    %168 = tpu.matmul %165, %167, %cst_49 {dimension_numbers = #tpu.dot_dimension_numbers<[1], [0], [0], [1], [0, 0, 1, 1], [], []>} : vector<32x64xbf16>, vector<64x32xbf16>, vector<32x32xf32> -> vector<32x32xf32>
    %169 = vector.extract_strided_slice %44 {offsets = [256], sizes = [32], strides = [1]} : vector<352xf32> to vector<32xf32>
    %170 = vector.shape_cast %169 : vector<32xf32> to vector<1x32xf32>
    %171 = vector.broadcast %170 : vector<1x32xf32> to vector<32x32xf32>
    %172 = arith.addf %168, %171 : vector<32x32xf32>
    %173 = arith.addf %143, %172 : vector<32x32xf32>
    %174 = vector.extract_strided_slice %44 {offsets = [288], sizes = [32], strides = [1]} : vector<352xf32> to vector<32xf32>
    %175 = vector.extract_strided_slice %44 {offsets = [320], sizes = [32], strides = [1]} : vector<352xf32> to vector<32xf32>
    %cst_50 = arith.constant dense<0.000000e+00> : vector<32xf32>
    %176 = vector.multi_reduction <add>, %173, %cst_50 [1] : vector<32x32xf32> to vector<32xf32>
    %177 = vector.shape_cast %176 : vector<32xf32> to vector<32x1xf32>
    %cst_51 = arith.constant 3.200000e+01 : f32
    %178 = vector.broadcast %cst_51 : f32 to vector<32x1xf32>
    %179 = arith.divf %177, %178 : vector<32x1xf32>
    %180 = vector.broadcast %179 : vector<32x1xf32> to vector<32x32xf32>
    %181 = arith.subf %173, %180 : vector<32x32xf32>
    %182 = arith.mulf %181, %181 : vector<32x32xf32>
    %cst_52 = arith.constant dense<0.000000e+00> : vector<32xf32>
    %183 = vector.multi_reduction <add>, %182, %cst_52 [1] : vector<32x32xf32> to vector<32xf32>
    %184 = vector.shape_cast %183 : vector<32xf32> to vector<32x1xf32>
    %cst_53 = arith.constant 3.200000e+01 : f32
    %185 = vector.broadcast %cst_53 : f32 to vector<32x1xf32>
    %186 = arith.divf %184, %185 : vector<32x1xf32>
    %187 = vector.broadcast %179 : vector<32x1xf32> to vector<32x32xf32>
    %188 = arith.subf %173, %187 : vector<32x32xf32>
    %cst_54 = arith.constant 9.99999996E-13 : f32
    %189 = vector.broadcast %cst_54 : f32 to vector<32x1xf32>
    %190 = arith.addf %186, %189 : vector<32x1xf32>
    %191 = math.rsqrt %190 : vector<32x1xf32>
    %192 = vector.broadcast %191 : vector<32x1xf32> to vector<32x32xf32>
    %193 = arith.mulf %188, %192 : vector<32x32xf32>
    %194 = vector.shape_cast %174 : vector<32xf32> to vector<1x32xf32>
    %195 = vector.broadcast %194 : vector<1x32xf32> to vector<32x32xf32>
    %196 = arith.mulf %193, %195 : vector<32x32xf32>
    %197 = vector.shape_cast %175 : vector<32xf32> to vector<1x32xf32>
    %198 = vector.broadcast %197 : vector<1x32xf32> to vector<32x32xf32>
    %199 = arith.addf %196, %198 : vector<32x32xf32>
    %c1 = arith.constant 1 : index
    %c0_55 = arith.constant 0 : index
    %200 = vector.load %arg8[%c1, %c0_55] : memref<2x352xf32, #tpu.memory_space<vmem>>, vector<1x352xf32>
    %201 = vector.shape_cast %200 : vector<1x352xf32> to vector<352xf32>
    %202 = arith.truncf %199 : vector<32x32xf32> to vector<32x32xbf16>
    %c1_56 = arith.constant 1 : index
    %c0_57 = arith.constant 0 : index
    %c0_58 = arith.constant 0 : index
    %203 = vector.load %arg4[%c1_56, %c0_57, %c0_58] : memref<2x32x96xbf16, #tpu.memory_space<vmem>>, vector<1x32x96xbf16>
    %204 = vector.shape_cast %203 : vector<1x32x96xbf16> to vector<32x96xbf16>
    %cst_59 = arith.constant dense<0.000000e+00> : vector<32x96xf32>
    %205 = tpu.matmul %202, %204, %cst_59 {dimension_numbers = #tpu.dot_dimension_numbers<[1], [0], [0], [1], [0, 0, 1, 1], [], []>} : vector<32x32xbf16>, vector<32x96xbf16>, vector<32x96xf32> -> vector<32x96xf32>
    %206 = vector.extract_strided_slice %201 {offsets = [0], sizes = [96], strides = [1]} : vector<352xf32> to vector<96xf32>
    %207 = vector.shape_cast %206 : vector<96xf32> to vector<1x96xf32>
    %208 = vector.broadcast %207 : vector<1x96xf32> to vector<32x96xf32>
    %209 = arith.addf %205, %208 : vector<32x96xf32>
    %210 = arith.truncf %209 : vector<32x96xf32> to vector<32x96xbf16>
    %c1_60 = arith.constant 1 : index
    %c0_61 = arith.constant 0 : index
    %c0_62 = arith.constant 0 : index
    %211 = vector.load %arg5[%c1_60, %c0_61, %c0_62] : memref<2x32x32xbf16, #tpu.memory_space<vmem>>, vector<1x32x32xbf16>
    %212 = vector.shape_cast %211 : vector<1x32x32xbf16> to vector<32x32xbf16>
    %cst_63 = arith.constant 0.000000e+00 : f32
    %213 = vector.broadcast %cst_63 : f32 to vector<32x32xf32>
    %214 = vector.extract_strided_slice %210 {offsets = [0, 0], sizes = [32, 16], strides = [1, 1]} : vector<32x96xbf16> to vector<32x16xbf16>
    %215 = vector.shape_cast %214 : vector<32x16xbf16> to vector<2x16x16xbf16>
    %216 = vector.extract_strided_slice %210 {offsets = [0, 32], sizes = [32, 16], strides = [1, 1]} : vector<32x96xbf16> to vector<32x16xbf16>
    %217 = vector.shape_cast %216 : vector<32x16xbf16> to vector<2x16x16xbf16>
    %218 = vector.extract_strided_slice %210 {offsets = [0, 64], sizes = [32, 16], strides = [1, 1]} : vector<32x96xbf16> to vector<32x16xbf16>
    %219 = vector.shape_cast %218 : vector<32x16xbf16> to vector<2x16x16xbf16>
    "tpu.trace_start"() <{level = 10 : i32, message = "bqd,bkd->bqk"}> : () -> ()
    %cst_64 = arith.constant dense<0.000000e+00> : vector<2x16x16xf32>
    %220 = tpu.matmul %215, %217, %cst_64 {dimension_numbers = #tpu.dot_dimension_numbers<[2], [2], [1], [1], [0, 0, 0, 1, 1, 1], [0], [0]>} : vector<2x16x16xbf16>, vector<2x16x16xbf16>, vector<2x16x16xf32> -> vector<2x16x16xf32>
    "tpu.trace_stop"() : () -> ()
    %cst_65 = arith.constant 2.500000e-01 : f32
    %221 = vector.broadcast %cst_65 : f32 to vector<2x16x16xf32>
    %222 = arith.mulf %220, %221 : vector<2x16x16xf32>
    %223 = vector.broadcast %41 : vector<2x1x16xf32> to vector<2x16x16xf32>
    %224 = arith.addf %222, %223 : vector<2x16x16xf32>
    %cst_66 = arith.constant dense<0xFF800000> : vector<2x16xf32>
    %225 = vector.multi_reduction <maximumf>, %224, %cst_66 [2] : vector<2x16x16xf32> to vector<2x16xf32>
    %226 = vector.shape_cast %225 : vector<2x16xf32> to vector<2x16x1xf32>
    %227 = vector.broadcast %226 : vector<2x16x1xf32> to vector<2x16x16xf32>
    %228 = arith.subf %224, %227 : vector<2x16x16xf32>
    %229 = math.exp %228 : vector<2x16x16xf32>
    %cst_67 = arith.constant dense<0.000000e+00> : vector<2x16xf32>
    %230 = vector.multi_reduction <add>, %229, %cst_67 [2] : vector<2x16x16xf32> to vector<2x16xf32>
    %231 = vector.shape_cast %230 : vector<2x16xf32> to vector<2x16x1xf32>
    %232 = tpu.reciprocal %231 {approx = true} : vector<2x16x1xf32> -> vector<2x16x1xf32>
    %233 = vector.broadcast %232 : vector<2x16x1xf32> to vector<2x16x16xf32>
    %234 = arith.mulf %229, %233 : vector<2x16x16xf32>
    %235 = arith.truncf %234 : vector<2x16x16xf32> to vector<2x16x16xbf16>
    "tpu.trace_start"() <{level = 10 : i32, message = "bqk,bkd->bqd"}> : () -> ()
    %cst_68 = arith.constant dense<0.000000e+00> : vector<2x16x16xf32>
    %236 = tpu.matmul %235, %219, %cst_68 {dimension_numbers = #tpu.dot_dimension_numbers<[2], [1], [1], [2], [0, 0, 0, 1, 1, 2], [0], [0]>} : vector<2x16x16xbf16>, vector<2x16x16xbf16>, vector<2x16x16xf32> -> vector<2x16x16xf32>
    "tpu.trace_stop"() : () -> ()
    %237 = vector.shape_cast %236 : vector<2x16x16xf32> to vector<32x16xf32>
    %238 = arith.truncf %237 : vector<32x16xf32> to vector<32x16xbf16>
    %239 = vector.extract_strided_slice %212 {offsets = [0, 0], sizes = [16, 32], strides = [1, 1]} : vector<32x32xbf16> to vector<16x32xbf16>
    %cst_69 = arith.constant dense<0.000000e+00> : vector<32x32xf32>
    %240 = tpu.matmul %238, %239, %cst_69 {dimension_numbers = #tpu.dot_dimension_numbers<[1], [0], [0], [1], [0, 0, 1, 1], [], []>} : vector<32x16xbf16>, vector<16x32xbf16>, vector<32x32xf32> -> vector<32x32xf32>
    %241 = arith.addf %213, %240 : vector<32x32xf32>
    %242 = vector.extract_strided_slice %210 {offsets = [0, 16], sizes = [32, 16], strides = [1, 1]} : vector<32x96xbf16> to vector<32x16xbf16>
    %243 = vector.shape_cast %242 : vector<32x16xbf16> to vector<2x16x16xbf16>
    %244 = vector.extract_strided_slice %210 {offsets = [0, 48], sizes = [32, 16], strides = [1, 1]} : vector<32x96xbf16> to vector<32x16xbf16>
    %245 = vector.shape_cast %244 : vector<32x16xbf16> to vector<2x16x16xbf16>
    %246 = vector.extract_strided_slice %210 {offsets = [0, 80], sizes = [32, 16], strides = [1, 1]} : vector<32x96xbf16> to vector<32x16xbf16>
    %247 = vector.shape_cast %246 : vector<32x16xbf16> to vector<2x16x16xbf16>
    "tpu.trace_start"() <{level = 10 : i32, message = "bqd,bkd->bqk"}> : () -> ()
    %cst_70 = arith.constant dense<0.000000e+00> : vector<2x16x16xf32>
    %248 = tpu.matmul %243, %245, %cst_70 {dimension_numbers = #tpu.dot_dimension_numbers<[2], [2], [1], [1], [0, 0, 0, 1, 1, 1], [0], [0]>} : vector<2x16x16xbf16>, vector<2x16x16xbf16>, vector<2x16x16xf32> -> vector<2x16x16xf32>
    "tpu.trace_stop"() : () -> ()
    %cst_71 = arith.constant 2.500000e-01 : f32
    %249 = vector.broadcast %cst_71 : f32 to vector<2x16x16xf32>
    %250 = arith.mulf %248, %249 : vector<2x16x16xf32>
    %251 = vector.broadcast %41 : vector<2x1x16xf32> to vector<2x16x16xf32>
    %252 = arith.addf %250, %251 : vector<2x16x16xf32>
    %cst_72 = arith.constant dense<0xFF800000> : vector<2x16xf32>
    %253 = vector.multi_reduction <maximumf>, %252, %cst_72 [2] : vector<2x16x16xf32> to vector<2x16xf32>
    %254 = vector.shape_cast %253 : vector<2x16xf32> to vector<2x16x1xf32>
    %255 = vector.broadcast %254 : vector<2x16x1xf32> to vector<2x16x16xf32>
    %256 = arith.subf %252, %255 : vector<2x16x16xf32>
    %257 = math.exp %256 : vector<2x16x16xf32>
    %cst_73 = arith.constant dense<0.000000e+00> : vector<2x16xf32>
    %258 = vector.multi_reduction <add>, %257, %cst_73 [2] : vector<2x16x16xf32> to vector<2x16xf32>
    %259 = vector.shape_cast %258 : vector<2x16xf32> to vector<2x16x1xf32>
    %260 = tpu.reciprocal %259 {approx = true} : vector<2x16x1xf32> -> vector<2x16x1xf32>
    %261 = vector.broadcast %260 : vector<2x16x1xf32> to vector<2x16x16xf32>
    %262 = arith.mulf %257, %261 : vector<2x16x16xf32>
    %263 = arith.truncf %262 : vector<2x16x16xf32> to vector<2x16x16xbf16>
    "tpu.trace_start"() <{level = 10 : i32, message = "bqk,bkd->bqd"}> : () -> ()
    %cst_74 = arith.constant dense<0.000000e+00> : vector<2x16x16xf32>
    %264 = tpu.matmul %263, %247, %cst_74 {dimension_numbers = #tpu.dot_dimension_numbers<[2], [1], [1], [2], [0, 0, 0, 1, 1, 2], [0], [0]>} : vector<2x16x16xbf16>, vector<2x16x16xbf16>, vector<2x16x16xf32> -> vector<2x16x16xf32>
    "tpu.trace_stop"() : () -> ()
    %265 = vector.shape_cast %264 : vector<2x16x16xf32> to vector<32x16xf32>
    %266 = arith.truncf %265 : vector<32x16xf32> to vector<32x16xbf16>
    %267 = vector.extract_strided_slice %212 {offsets = [16, 0], sizes = [16, 32], strides = [1, 1]} : vector<32x32xbf16> to vector<16x32xbf16>
    %cst_75 = arith.constant dense<0.000000e+00> : vector<32x32xf32>
    %268 = tpu.matmul %266, %267, %cst_75 {dimension_numbers = #tpu.dot_dimension_numbers<[1], [0], [0], [1], [0, 0, 1, 1], [], []>} : vector<32x16xbf16>, vector<16x32xbf16>, vector<32x32xf32> -> vector<32x32xf32>
    %269 = arith.addf %241, %268 : vector<32x32xf32>
    %270 = vector.extract_strided_slice %201 {offsets = [96], sizes = [32], strides = [1]} : vector<352xf32> to vector<32xf32>
    %271 = vector.shape_cast %270 : vector<32xf32> to vector<1x32xf32>
    %272 = vector.broadcast %271 : vector<1x32xf32> to vector<32x32xf32>
    %273 = arith.addf %269, %272 : vector<32x32xf32>
    %274 = arith.addf %199, %273 : vector<32x32xf32>
    %275 = vector.extract_strided_slice %201 {offsets = [128], sizes = [32], strides = [1]} : vector<352xf32> to vector<32xf32>
    %276 = vector.extract_strided_slice %201 {offsets = [160], sizes = [32], strides = [1]} : vector<352xf32> to vector<32xf32>
    %cst_76 = arith.constant dense<0.000000e+00> : vector<32xf32>
    %277 = vector.multi_reduction <add>, %274, %cst_76 [1] : vector<32x32xf32> to vector<32xf32>
    %278 = vector.shape_cast %277 : vector<32xf32> to vector<32x1xf32>
    %cst_77 = arith.constant 3.200000e+01 : f32
    %279 = vector.broadcast %cst_77 : f32 to vector<32x1xf32>
    %280 = arith.divf %278, %279 : vector<32x1xf32>
    %281 = vector.broadcast %280 : vector<32x1xf32> to vector<32x32xf32>
    %282 = arith.subf %274, %281 : vector<32x32xf32>
    %283 = arith.mulf %282, %282 : vector<32x32xf32>
    %cst_78 = arith.constant dense<0.000000e+00> : vector<32xf32>
    %284 = vector.multi_reduction <add>, %283, %cst_78 [1] : vector<32x32xf32> to vector<32xf32>
    %285 = vector.shape_cast %284 : vector<32xf32> to vector<32x1xf32>
    %cst_79 = arith.constant 3.200000e+01 : f32
    %286 = vector.broadcast %cst_79 : f32 to vector<32x1xf32>
    %287 = arith.divf %285, %286 : vector<32x1xf32>
    %288 = vector.broadcast %280 : vector<32x1xf32> to vector<32x32xf32>
    %289 = arith.subf %274, %288 : vector<32x32xf32>
    %cst_80 = arith.constant 9.99999996E-13 : f32
    %290 = vector.broadcast %cst_80 : f32 to vector<32x1xf32>
    %291 = arith.addf %287, %290 : vector<32x1xf32>
    %292 = math.rsqrt %291 : vector<32x1xf32>
    %293 = vector.broadcast %292 : vector<32x1xf32> to vector<32x32xf32>
    %294 = arith.mulf %289, %293 : vector<32x32xf32>
    %295 = vector.shape_cast %275 : vector<32xf32> to vector<1x32xf32>
    %296 = vector.broadcast %295 : vector<1x32xf32> to vector<32x32xf32>
    %297 = arith.mulf %294, %296 : vector<32x32xf32>
    %298 = vector.shape_cast %276 : vector<32xf32> to vector<1x32xf32>
    %299 = vector.broadcast %298 : vector<1x32xf32> to vector<32x32xf32>
    %300 = arith.addf %297, %299 : vector<32x32xf32>
    %301 = arith.truncf %300 : vector<32x32xf32> to vector<32x32xbf16>
    %c1_81 = arith.constant 1 : index
    %c0_82 = arith.constant 0 : index
    %c0_83 = arith.constant 0 : index
    %302 = vector.load %arg6[%c1_81, %c0_82, %c0_83] : memref<2x32x64xbf16, #tpu.memory_space<vmem>>, vector<1x32x64xbf16>
    %303 = vector.shape_cast %302 : vector<1x32x64xbf16> to vector<32x64xbf16>
    %cst_84 = arith.constant dense<0.000000e+00> : vector<32x64xf32>
    %304 = tpu.matmul %301, %303, %cst_84 {dimension_numbers = #tpu.dot_dimension_numbers<[1], [0], [0], [1], [0, 0, 1, 1], [], []>} : vector<32x32xbf16>, vector<32x64xbf16>, vector<32x64xf32> -> vector<32x64xf32>
    %305 = vector.extract_strided_slice %201 {offsets = [192], sizes = [64], strides = [1]} : vector<352xf32> to vector<64xf32>
    %306 = vector.shape_cast %305 : vector<64xf32> to vector<1x64xf32>
    %307 = vector.broadcast %306 : vector<1x64xf32> to vector<32x64xf32>
    %308 = arith.addf %304, %307 : vector<32x64xf32>
    %cst_85 = arith.constant 5.000000e-01 : f32
    %309 = vector.broadcast %cst_85 : f32 to vector<32x64xf32>
    %310 = arith.mulf %309, %308 : vector<32x64xf32>
    %cst_86 = arith.constant 4.471500e-02 : f32
    %311 = vector.broadcast %cst_86 : f32 to vector<32x64xf32>
    %312 = arith.mulf %311, %308 : vector<32x64xf32>
    %313 = arith.mulf %312, %308 : vector<32x64xf32>
    %314 = arith.mulf %313, %308 : vector<32x64xf32>
    %315 = arith.addf %308, %314 : vector<32x64xf32>
    %cst_87 = arith.constant 0.797884583 : f32
    %316 = vector.broadcast %cst_87 : f32 to vector<32x64xf32>
    %317 = arith.mulf %316, %315 : vector<32x64xf32>
    %318 = math.tanh %317 : vector<32x64xf32>
    %cst_88 = arith.constant 1.000000e+00 : f32
    %319 = vector.broadcast %cst_88 : f32 to vector<32x64xf32>
    %320 = arith.addf %319, %318 : vector<32x64xf32>
    %321 = arith.mulf %310, %320 : vector<32x64xf32>
    %322 = arith.truncf %321 : vector<32x64xf32> to vector<32x64xbf16>
    %c1_89 = arith.constant 1 : index
    %c0_90 = arith.constant 0 : index
    %c0_91 = arith.constant 0 : index
    %323 = vector.load %arg7[%c1_89, %c0_90, %c0_91] : memref<2x64x32xbf16, #tpu.memory_space<vmem>>, vector<1x64x32xbf16>
    %324 = vector.shape_cast %323 : vector<1x64x32xbf16> to vector<64x32xbf16>
    %cst_92 = arith.constant dense<0.000000e+00> : vector<32x32xf32>
    %325 = tpu.matmul %322, %324, %cst_92 {dimension_numbers = #tpu.dot_dimension_numbers<[1], [0], [0], [1], [0, 0, 1, 1], [], []>} : vector<32x64xbf16>, vector<64x32xbf16>, vector<32x32xf32> -> vector<32x32xf32>
    %326 = vector.extract_strided_slice %201 {offsets = [256], sizes = [32], strides = [1]} : vector<352xf32> to vector<32xf32>
    %327 = vector.shape_cast %326 : vector<32xf32> to vector<1x32xf32>
    %328 = vector.broadcast %327 : vector<1x32xf32> to vector<32x32xf32>
    %329 = arith.addf %325, %328 : vector<32x32xf32>
    %330 = arith.addf %300, %329 : vector<32x32xf32>
    %331 = vector.extract_strided_slice %201 {offsets = [288], sizes = [32], strides = [1]} : vector<352xf32> to vector<32xf32>
    %332 = vector.extract_strided_slice %201 {offsets = [320], sizes = [32], strides = [1]} : vector<352xf32> to vector<32xf32>
    %cst_93 = arith.constant dense<0.000000e+00> : vector<32xf32>
    %333 = vector.multi_reduction <add>, %330, %cst_93 [1] : vector<32x32xf32> to vector<32xf32>
    %334 = vector.shape_cast %333 : vector<32xf32> to vector<32x1xf32>
    %cst_94 = arith.constant 3.200000e+01 : f32
    %335 = vector.broadcast %cst_94 : f32 to vector<32x1xf32>
    %336 = arith.divf %334, %335 : vector<32x1xf32>
    %337 = vector.broadcast %336 : vector<32x1xf32> to vector<32x32xf32>
    %338 = arith.subf %330, %337 : vector<32x32xf32>
    %339 = arith.mulf %338, %338 : vector<32x32xf32>
    %cst_95 = arith.constant dense<0.000000e+00> : vector<32xf32>
    %340 = vector.multi_reduction <add>, %339, %cst_95 [1] : vector<32x32xf32> to vector<32xf32>
    %341 = vector.shape_cast %340 : vector<32xf32> to vector<32x1xf32>
    %cst_96 = arith.constant 3.200000e+01 : f32
    %342 = vector.broadcast %cst_96 : f32 to vector<32x1xf32>
    %343 = arith.divf %341, %342 : vector<32x1xf32>
    %344 = vector.broadcast %336 : vector<32x1xf32> to vector<32x32xf32>
    %345 = arith.subf %330, %344 : vector<32x32xf32>
    %cst_97 = arith.constant 9.99999996E-13 : f32
    %346 = vector.broadcast %cst_97 : f32 to vector<32x1xf32>
    %347 = arith.addf %343, %346 : vector<32x1xf32>
    %348 = math.rsqrt %347 : vector<32x1xf32>
    %349 = vector.broadcast %348 : vector<32x1xf32> to vector<32x32xf32>
    %350 = arith.mulf %345, %349 : vector<32x32xf32>
    %351 = vector.shape_cast %331 : vector<32xf32> to vector<1x32xf32>
    %352 = vector.broadcast %351 : vector<1x32xf32> to vector<32x32xf32>
    %353 = arith.mulf %350, %352 : vector<32x32xf32>
    %354 = vector.shape_cast %332 : vector<32xf32> to vector<1x32xf32>
    %355 = vector.broadcast %354 : vector<1x32xf32> to vector<32x32xf32>
    %356 = arith.addf %353, %355 : vector<32x32xf32>
    %357 = vector.shape_cast %356 : vector<32x32xf32> to vector<2x16x32xf32>
    "tpu.trace_start"() <{level = 10 : i32, message = "bqs,bsh->bqh"}> : () -> ()
    %cst_98 = arith.constant dense<0.000000e+00> : vector<2x1x32xf32>
    %358 = tpu.matmul %42, %357, %cst_98 {dimension_numbers = #tpu.dot_dimension_numbers<[2], [1], [1], [2], [0, 0, 0, 1, 1, 2], [0], [0]>} : vector<2x1x16xf32>, vector<2x16x32xf32>, vector<2x1x32xf32> -> vector<2x1x32xf32>
    "tpu.trace_stop"() : () -> ()
    %359 = vector.shape_cast %358 : vector<2x1x32xf32> to vector<2x32xf32>
    %c0_99 = arith.constant 0 : index
    %c0_100 = arith.constant 0 : index
    %360 = vector.load %arg9[%c0_99, %c0_100] : memref<2x32xf32, #tpu.memory_space<vmem>>, vector<2x32xf32>
    tpu.vector_store %arg9[%c0_99, %c0_100], %359 {strides = array<i32>} : memref<2x32xf32, #tpu.memory_space<vmem>>, vector<2x32xf32>,
    return
  }
  func.func @transform_0(%arg0: i32) -> (i32, i32, i32) {
    %c0_i32 = arith.constant 0 : i32
    %c0_i32_0 = arith.constant 0 : i32
    %c0_i32_1 = arith.constant 0 : i32
    return %arg0, %c0_i32, %c0_i32_0 : i32, i32, i32
  }
  func.func @transform_1(%arg0: i32) -> (i32, i32, i32) {
    %c0_i32 = arith.constant 0 : i32
    %c0_i32_0 = arith.constant 0 : i32
    %c0_i32_1 = arith.constant 0 : i32
    return %arg0, %c0_i32, %c0_i32_0 : i32, i32, i32
  }
  func.func @transform_2(%arg0: i32) -> (i32, i32) {
    %c0_i32 = arith.constant 0 : i32
    %c0_i32_0 = arith.constant 0 : i32
    %c0_i32_1 = arith.constant 0 : i32
    return %c0_i32, %c0_i32_0 : i32, i32
  }
  func.func @transform_3(%arg0: i32) -> (i32, i32, i32) {
    %c0_i32 = arith.constant 0 : i32
    %c0_i32_0 = arith.constant 0 : i32
    %c0_i32_1 = arith.constant 0 : i32
    %c0_i32_2 = arith.constant 0 : i32
    return %c0_i32, %c0_i32_0, %c0_i32_1 : i32, i32, i32
  }
  func.func @transform_4(%arg0: i32) -> (i32, i32, i32) {
    %c0_i32 = arith.constant 0 : i32
    %c0_i32_0 = arith.constant 0 : i32
    %c0_i32_1 = arith.constant 0 : i32
    %c0_i32_2 = arith.constant 0 : i32
    return %c0_i32, %c0_i32_0, %c0_i32_1 : i32, i32, i32
  }
  func.func @transform_5(%arg0: i32) -> (i32, i32, i32) {
    %c0_i32 = arith.constant 0 : i32
    %c0_i32_0 = arith.constant 0 : i32
    %c0_i32_1 = arith.constant 0 : i32
    %c0_i32_2 = arith.constant 0 : i32
    return %c0_i32, %c0_i32_0, %c0_i32_1 : i32, i32, i32
  }
  func.func @transform_6(%arg0: i32) -> (i32, i32, i32) {
    %c0_i32 = arith.constant 0 : i32
    %c0_i32_0 = arith.constant 0 : i32
    %c0_i32_1 = arith.constant 0 : i32
    %c0_i32_2 = arith.constant 0 : i32
    return %c0_i32, %c0_i32_0, %c0_i32_1 : i32, i32, i32
  }
  func.func @transform_7(%arg0: i32) -> (i32, i32) {
    %c0_i32 = arith.constant 0 : i32
    %c0_i32_0 = arith.constant 0 : i32
    %c0_i32_1 = arith.constant 0 : i32
    return %c0_i32, %c0_i32_0 : i32, i32
  }
  func.func @transform_8(%arg0: i32) -> (i32, i32) {
    %c0_i32 = arith.constant 0 : i32
    %c0_i32_0 = arith.constant 0 : i32
    return %arg0, %c0_i32 : i32, i32
  }
}

</mosaic_0001>

<llo_original>
// kernel: tpu_custom_call.1
$region0: #{tpu_custom_call.1}
  #allocation0 [shape = 'u32[]', space=smem, size = 0x4, offset = 0x4, fixed_abs, tag = 'smem constant byte address 0x4 - core index']
  #allocation1 [shape = 'u32[72,128]{1,0:T(1,128)}', space=vmem, size = 0x9000, scoped, tag = 'internal scratch']
  %s0 = inlined_call_operand.vmem [shape: f32[2,16,32], index: 0, kind: input, shape index: {}]
  %s1 = inlined_call_operand.hbm [shape: f32[2,2,16], index: 1, kind: input, shape index: {}]
  %s2 = inlined_call_operand.hbm [shape: f32[19,32], index: 2, kind: input, shape index: {}]
  %s3 = inlined_call_operand.vmem [shape: bf16[2,32,96], index: 3, kind: input, shape index: {}]
  %s4 = inlined_call_operand.vmem [shape: bf16[2,32,32], index: 4, kind: input, shape index: {}]
  %s5 = inlined_call_operand.hbm [shape: bf16[2,32,64], index: 5, kind: input, shape index: {}]
  %s6 = inlined_call_operand.vmem [shape: bf16[2,64,32], index: 6, kind: input, shape index: {}]
  %s7 = inlined_call_operand.hbm [shape: f32[2,352], index: 7, kind: input, shape index: {}]
  %s8 = inlined_call_operand.hbm [shape: f32[2,32], index: 8, kind: output, shape index: {}]
  %s9 = sld [smem:[#allocation0]]
  $region58: #{tpu_custom_call.1} parent=0
    _
  %s11 = ssub.s32 1, %s9
  %s12 = scalar_select 0, %s11, %s9
  $region1: #{tpu_custom_call.1} parent=0
    #allocation2 [shape = 'u8[2048]{0}', space=vmem, size = 0x800, scoped, tag = 'input window, operand 1, single buffered']
    #allocation3 [shape = 's32[1]{0}', space=sflag, size = 0x4, scoped, tag = 'scoped memory for tpu_custom_call.1']
    #allocation4 [shape = 's32[1]{0}', space=sflag, size = 0x4, scoped, tag = 'scoped memory for tpu_custom_call.1']
    #allocation5 [shape = 'u8[12288]{0}', space=vmem, size = 0x3000, scoped, tag = 'input window, operand 2, single buffered']
    #allocation6 [shape = 's32[1]{0}', space=sflag, size = 0x4, scoped, tag = 'scoped memory for tpu_custom_call.1']
    #allocation7 [shape = 'u8[16384]{0}', space=vmem, size = 0x4000, scoped, tag = 'input window, operand 5, single buffered']
    #allocation8 [shape = 'u8[3072]{0}', space=vmem, size = 0xc00, scoped, tag = 'input window, operand 7, single buffered']
    #allocation9 [shape = 's32[1]{0}', space=sflag, size = 0x4, scoped, tag = 'scoped memory for tpu_custom_call.1']
    #allocation10 [shape = 'u8[1024]{0}', space=vmem, size = 0x400, scoped, tag = 'output window, operand 0, single buffered']
    %13 = vsyncpa [#allocation3], 0
    %14 = vsyncpa [#allocation6], 0
    %15 = vsyncpa [#allocation9], 0
    %16 = vsyncpa [#allocation4], 0
    // Predicated region
    $region2: #{tpu_custom_call.1} parent=1 // pred_check
      _
    $region3: #{tpu_custom_call.1} parent=1 // pred_check_branch
      %18 = sbr.rel (0) target = $region5
    $region4: #{tpu_custom_call.1} parent=1 // pred_region
      _
    $region5: #{tpu_custom_call.1} parent=1 // pred_fallthru
      _
    // Predicated region
    $region6: #{tpu_custom_call.1} parent=1 // pred_check
      _
    $region7: #{tpu_custom_call.1} parent=1 // pred_check_branch
      %20 = sbr.rel (0) target = $region9
    $region8: #{tpu_custom_call.1} parent=1 // pred_region
      %22 = vsyncadd [#allocation3], 0
      %s23 = sshll.u32 %s1, 4
      %s24 = int_to_ptr.hbm [resolvable:$true] %s23
      %s25 = sshll.u32 [#allocation2], 4
      %s26 = int_to_ptr.vmem [resolvable:$true] %s25
      %31 = dma.hbm_to_vmem [thread:$0]  %s24, 64, %s26, [#allocation3], 32, 32, 2
    $region9: #{tpu_custom_call.1} parent=1 // pred_fallthru
      _
    // Predicated region
    $region10: #{tpu_custom_call.1} parent=1 // pred_check
      _
    $region11: #{tpu_custom_call.1} parent=1 // pred_check_branch
      %33 = sbr.rel (0) target = $region13
    $region12: #{tpu_custom_call.1} parent=1 // pred_region
      %35 = vsyncadd [#allocation6], 0
      %s36 = sshll.u32 %s2, 4
      %s37 = int_to_ptr.hbm [resolvable:$true] %s36
      %s38 = sshll.u32 [#allocation5], 4
      %s39 = int_to_ptr.vmem [resolvable:$true] %s38
      %44 = dma.hbm_to_vmem [thread:$0]  %s37, 384, %s39, [#allocation6], 128, 128, 8
    $region13: #{tpu_custom_call.1} parent=1 // pred_fallthru
      _
    // Predicated region
    $region14: #{tpu_custom_call.1} parent=1 // pred_check
      _
    $region15: #{tpu_custom_call.1} parent=1 // pred_check_branch
      %46 = sbr.rel (0) target = $region17
    $region16: #{tpu_custom_call.1} parent=1 // pred_region
      _
    $region17: #{tpu_custom_call.1} parent=1 // pred_fallthru
      _
    // Predicated region
    $region18: #{tpu_custom_call.1} parent=1 // pred_check
      _
    $region19: #{tpu_custom_call.1} parent=1 // pred_check_branch
      %48 = sbr.rel (0) target = $region21
    $region20: #{tpu_custom_call.1} parent=1 // pred_region
      _
    $region21: #{tpu_custom_call.1} parent=1 // pred_fallthru
      _
    // Predicated region
    $region22: #{tpu_custom_call.1} parent=1 // pred_check
      _
    $region23: #{tpu_custom_call.1} parent=1 // pred_check_branch
      %50 = sbr.rel (0) target = $region25
    $region24: #{tpu_custom_call.1} parent=1 // pred_region
      %52 = vsyncadd [#allocation6], 0
      %s53 = sshll.u32 %s5, 4
      %s54 = int_to_ptr.hbm [resolvable:$true] %s53
      %s55 = sshll.u32 [#allocation7], 4
      %s56 = int_to_ptr.vmem [resolvable:$true] %s55
      %61 = dma.hbm_to_vmem [thread:$0]  %s54, 512, %s56, [#allocation6], 64, 64, 4
    $region25: #{tpu_custom_call.1} parent=1 // pred_fallthru
      _
    // Predicated region
    $region26: #{tpu_custom_call.1} parent=1 // pred_check
      _
    $region27: #{tpu_custom_call.1} parent=1 // pred_check_branch
      %63 = sbr.rel (0) target = $region29
    $region28: #{tpu_custom_call.1} parent=1 // pred_region
      _
    $region29: #{tpu_custom_call.1} parent=1 // pred_fallthru
      _
    // Predicated region
    $region30: #{tpu_custom_call.1} parent=1 // pred_check
      _
    $region31: #{tpu_custom_call.1} parent=1 // pred_check_branch
      %65 = sbr.rel (0) target = $region33
    $region32: #{tpu_custom_call.1} parent=1 // pred_region
      %67 = vsyncadd [#allocation9], 0
      %s69 = sshll.u32 %s7, 4
      %s70 = int_to_ptr.hbm [resolvable:$true] %s69
      %s71 = sshll.u32 [#allocation8], 4
      %s72 = int_to_ptr.vmem [resolvable:$true] %s71
      %74 = dma.hbm_to_vmem [thread:$0]  %s70, 96, %s72, [#allocation9]
    $region33: #{tpu_custom_call.1} parent=1 // pred_fallthru
      _
    // Predicated region
    $region34: #{tpu_custom_call.1} parent=1 // pred_check
      _
    $region35: #{tpu_custom_call.1} parent=1 // pred_check_branch
      %76 = sbr.rel (0) target = $region37
    $region36: #{tpu_custom_call.1} parent=1 // pred_region
      %78 = dma.done [#allocation3], 64
    $region37: #{tpu_custom_call.1} parent=1 // pred_fallthru
      _
    // Predicated region
    $region38: #{tpu_custom_call.1} parent=1 // pred_check
      _
    $region39: #{tpu_custom_call.1} parent=1 // pred_check_branch
      %80 = sbr.rel (0) target = $region41
    $region40: #{tpu_custom_call.1} parent=1 // pred_region
      %82 = dma.done [#allocation6], 384
    $region41: #{tpu_custom_call.1} parent=1 // pred_fallthru
      _
    // Predicated region
    $region42: #{tpu_custom_call.1} parent=1 // pred_check
      _
    $region43: #{tpu_custom_call.1} parent=1 // pred_check_branch
      %84 = sbr.rel (0) target = $region45
    $region44: #{tpu_custom_call.1} parent=1 // pred_region
      %86 = dma.done [#allocation6], 512
    $region45: #{tpu_custom_call.1} parent=1 // pred_fallthru
      _
    // Predicated region
    $region46: #{tpu_custom_call.1} parent=1 // pred_check
      _
    $region47: #{tpu_custom_call.1} parent=1 // pred_check_branch
      %88 = sbr.rel (0) target = $region49
    $region48: #{tpu_custom_call.1} parent=1 // pred_region
      %90 = dma.done [#allocation9], 96
    $region49: #{tpu_custom_call.1} parent=1 // pred_fallthru
      _
    %v92 = vld [vmem:[#allocation5] sm:$0xff]
    %v93 = vld [vmem:[#allocation5 + $0x8] sm:$0xff]
    %v94 = vld [vmem:[#allocation5 + $0x10] sm:$0x7]
    %v95 = vld [vmem:[%s0] sm:$0xff]
    %v96 = vld [vmem:[%s0 + $0x8] sm:$0xff]
    %v97 = vld [vmem:[%s0 + $0x10] sm:$0xff]
    %v98 = vld [vmem:[%s0 + $0x18] sm:$0xff]
    %v99 = vadd.f32 %v95, %v92
    %v100 = vadd.f32 %v96, %v93
    %v101 = vadd.f32 %v97, %v92
    %v102 = vadd.f32 %v98, %v93
    %v103 = vperm.slane %v94, 0
    %v104 = vadd.f32 %v99, %v103
    %v105 = vadd.f32 %v100, %v103
    %v106 = vadd.f32 %v101, %v103
    %v107 = vadd.f32 %v102, %v103
    %vm108 = vcmask 261120
    %v109 = vsel %vm108, %v104, 0.0
    %110 = vadd.xlane.f32.xlu0 %v109
    %v111 = vpop.xlane.xlu0 %110
    %v112 = vsel %vm108, %v105, 0.0
    %113 = vadd.xlane.f32.xlu0 %v112
    %v114 = vpop.xlane.xlu0 %113
    %v115 = vsel %vm108, %v106, 0.0
    %116 = vadd.xlane.f32.xlu0 %v115
    %v117 = vpop.xlane.xlu0 %116
    %v118 = vsel %vm108, %v107, 0.0
    %119 = vadd.xlane.f32.xlu0 %v118
    %v120 = vpop.xlane.xlu0 %119
    %v121 = vrcp.pop 32.0
    %v122 = vmul.f32 32.0, %v121
    %v123 = vsub.f32 1.0, %v122
    %v124 = vmul.f32 %v121, %v123
    %v125 = vadd.f32 %v121, %v124
    %vm126 = vweird.f32 %v121
    %v127 = vsel %vm126, %v121, %v125
    %v128 = vmul.f32 %v111, %v127
    %v129 = vmul.f32 %v114, %v127
    %v130 = vmul.f32 %v117, %v127
    %v131 = vmul.f32 %v120, %v127
    %v132 = vsub.f32 %v104, %v128
    %v133 = vsub.f32 %v105, %v129
    %v134 = vsub.f32 %v106, %v130
    %v135 = vsub.f32 %v107, %v131
    %v136 = vmul.f32 %v132, %v132
    %v137 = vmul.f32 %v133, %v133
    %v138 = vmul.f32 %v134, %v134
    %v139 = vmul.f32 %v135, %v135
    %v140 = vsel %vm108, %v136, 0.0
    %141 = vadd.xlane.f32.xlu0 %v140
    %v142 = vpop.xlane.xlu0 %141
    %v143 = vsel %vm108, %v137, 0.0
    %144 = vadd.xlane.f32.xlu0 %v143
    %v145 = vpop.xlane.xlu0 %144
    %v146 = vsel %vm108, %v138, 0.0
    %147 = vadd.xlane.f32.xlu0 %v146
    %v148 = vpop.xlane.xlu0 %147
    %v149 = vsel %vm108, %v139, 0.0
    %150 = vadd.xlane.f32.xlu0 %v149
    %v151 = vpop.xlane.xlu0 %150
    %v152 = vmul.f32 %v142, %v127
    %v153 = vmul.f32 %v145, %v127
    %v154 = vmul.f32 %v148, %v127
    %v155 = vmul.f32 %v151, %v127
    %v156 = vadd.f32 %v152, 1e-12
    %v157 = vadd.f32 %v153, 1e-12
    %v158 = vadd.f32 %v154, 1e-12
    %v159 = vadd.f32 %v155, 1e-12
    %v160 = vrsqrt.pop %v156
    %v161 = vmul.f32 %v160, %v156
    %v162 = vmul.f32 %v161, %v160
    %v163 = vmul.f32 0.5, %v162
    %v164 = vsub.f32 1.5, %v163
    %v165 = vmul.f32 %v160, %v164
    %vm166 = vweird.f32 %v156
    %vm167 = vweird.f32 %v160
    %vm168 = vmor %vm166, %vm167
    %v169 = vsel %vm168, %v160, %v165
    %v170 = vrsqrt.pop %v157
    %v171 = vmul.f32 %v170, %v157
    %v172 = vmul.f32 %v171, %v170
    %v173 = vmul.f32 0.5, %v172
    %v174 = vsub.f32 1.5, %v173
    %v175 = vmul.f32 %v170, %v174
    %vm176 = vweird.f32 %v157
    %vm177 = vweird.f32 %v170
    %vm178 = vmor %vm176, %vm177
    %v179 = vsel %vm178, %v170, %v175
    %v180 = vrsqrt.pop %v158
    %v181 = vmul.f32 %v180, %v158
    %v182 = vmul.f32 %v181, %v180
    %v183 = vmul.f32 0.5, %v182
    %v184 = vsub.f32 1.5, %v183
    %v185 = vmul.f32 %v180, %v184
    %vm186 = vweird.f32 %v158
    %vm187 = vweird.f32 %v180
    %vm188 = vmor %vm186, %vm187
    %v189 = vsel %vm188, %v180, %v185
    %v190 = vrsqrt.pop %v159
    %v191 = vmul.f32 %v190, %v159
    %v192 = vmul.f32 %v191, %v190
    %v193 = vmul.f32 0.5, %v192
    %v194 = vsub.f32 1.5, %v193
    %v195 = vmul.f32 %v190, %v194
    %vm196 = vweird.f32 %v159
    %vm197 = vweird.f32 %v190
    %vm198 = vmor %vm196, %vm197
    %v199 = vsel %vm198, %v190, %v195
    %v200 = vmul.f32 %v132, %v169
    %v201 = vmul.f32 %v133, %v179
    %v202 = vmul.f32 %v134, %v189
    %v203 = vmul.f32 %v135, %v199
    %v204 = vperm.slane %v94, 1
    %v205 = vmul.f32 %v200, %v204
    %v206 = vmul.f32 %v201, %v204
    %v207 = vmul.f32 %v202, %v204
    %v208 = vmul.f32 %v203, %v204
    %v209 = vperm.slane %v94, 2
    %v210 = vadd.f32 %v205, %v209
    %v211 = vadd.f32 %v206, %v209
    %v212 = vadd.f32 %v207, %v209
    %v213 = vadd.f32 %v208, %v209
    %v214 = vld [vmem:[#allocation2] sm:$0x3]
    %v215 = vld [vmem:[#allocation2 + $0x2] sm:$0x3]
    %v216 = vld [vmem:[#allocation8] ss:$2 sm:$0x7]
    %v217 = vpack.c.bf16 %v211, %v210
    %v218 = vpack.c.bf16 %v213, %v212
    %v219 = vld [vmem:[%s3] sm:$0xf]
    %v220 = vld [vmem:[%s3 + $0x4] sm:$0xf]
    %v221 = vld [vmem:[%s3 + $0x8] sm:$0xf]
    %v222 = vld [vmem:[%s3 + $0xc] sm:$0xf]
    %v224 = vperm.slane %v216, 0
    %v230 = vunpack.c.l.b16 %v219
    %v231 = vunpack.c.l.b16 %v220
    %v232 = vunpack.c.l.b16 %v221
    %v233 = vunpack.c.l.b16 %v222
    %v234 = vpack.c.b16 %v231, %v230
    %v235 = vpack.c.b16 %v233, %v232
    %v239 = vsel %vm108, %v217, 0
    %v242 = vsel %vm108, %v218, 0
    %244 = vmatpush.bf16.msra.mxu0 0
    %245 = vmatpush.bf16.msra.mxu0 0
    %246 = vmatpush.bf16.msra.mxu0 0
    %247 = vmatpush.bf16.msra.mxu0 0
    %248 = vmatpush.bf16.msra.mxu0 0
    %249 = vmatpush.bf16.msra.mxu0 0
    %250 = vmatpush.bf16.msra.mxu0 %v235
    %251 = vmatpush.bf16.msra.mxu0 %v234
    %252 = vmatmul.bf16.gmra.mxu0 %v239
    %v253 = vpop.f32.mrf.mxu0
    %v254 = vadd.f32 %v224, %v253
    %v255 = vpop.f32.mrf.mxu0
    %v256 = vadd.f32 %v224, %v255
    %257 = vmatmul.bf16.gmra.mxu0 %v242
    %v258 = vpop.f32.mrf.mxu0
    %v259 = vadd.f32 %v224, %v258
    %v260 = vpop.f32.mrf.mxu0
    %v261 = vadd.f32 %v224, %v260
    %262 = vdwg.mxu0
    %v263 = vpack.c.bf16 %v254, %v254
    %v264 = vpack.c.bf16 %v256, %v256
    %v265 = vpack.c.bf16 %v259, %v259
    %v266 = vpack.c.bf16 %v261, %v261
    %v267 = vld [vmem:[%s4] sm:$0xf]
    %v268 = vld [vmem:[%s4 + $0x4] sm:$0xf]
    %v269 = vld [vmem:[%s4 + $0x8] sm:$0xf]
    %v270 = vld [vmem:[%s4 + $0xc] sm:$0xf]
    %v273 = vunpack.c.l.b16 %v263
    %v274 = vunpack.c.l.b16 %v264
    %v275 = vpack.c.b16 %v274, %v273
    %276 = vrot.lane.b32.xlu0 %v275, 96
    %v277 = vpop.permute.xlu0 %276
    %vm278 = vcmask 130048
    %v280 = vsel %vm278, %v275, 0
    %v283 = vsel %vm278, %v277, 0
    %285 = vmatpush.bf16.xpose.msra.mxu0 0
    %286 = vmatpush.bf16.xpose.msra.mxu0 0
    %287 = vmatpush.bf16.xpose.msra.mxu0 0
    %288 = vmatpush.bf16.xpose.msra.mxu0 0
    %289 = vmatpush.bf16.xpose.msra.mxu0 0
    %290 = vmatpush.bf16.xpose.msra.mxu0 0
    %291 = vmatpush.bf16.xpose.msra.mxu0 0
    %292 = vmatpush.bf16.xpose.msra.mxu0 %v283
    %293 = vmatmul.bf16.gmra.mxu0 %v280
    %v294 = vpop.f32.mrf.mxu0
    %v295 = vadd.f32 0.0, %v294
    %v296 = vpop.f32.mrf.mxu0
    %v297 = vadd.f32 0.0, %v296
    %298 = vdwg.mxu0
    %v301 = vunpack.c.l.b16 %v265
    %v302 = vunpack.c.l.b16 %v266
    %v303 = vpack.c.b16 %v302, %v301
    %304 = vrot.lane.b32.xlu0 %v303, 96
    %v305 = vpop.permute.xlu0 %304
    %v307 = vsel %vm278, %v303, 0
    %v310 = vsel %vm278, %v305, 0
    %312 = vmatpush.bf16.xpose.msra.mxu0 0
    %313 = vmatpush.bf16.xpose.msra.mxu0 0
    %314 = vmatpush.bf16.xpose.msra.mxu0 0
    %315 = vmatpush.bf16.xpose.msra.mxu0 0
    %316 = vmatpush.bf16.xpose.msra.mxu0 0
    %317 = vmatpush.bf16.xpose.msra.mxu0 0
    %318 = vmatpush.bf16.xpose.msra.mxu0 0
    %319 = vmatpush.bf16.xpose.msra.mxu0 %v310
    %320 = vmatmul.bf16.gmra.mxu0 %v307
    %v321 = vpop.f32.mrf.mxu0
    %v322 = vadd.f32 0.0, %v321
    %v323 = vpop.f32.mrf.mxu0
    %v324 = vadd.f32 0.0, %v323
    %325 = vdwg.mxu0
    %v326 = vmul.f32 %v295, 0.25
    %v327 = vmul.f32 %v297, 0.25
    %v328 = vmul.f32 %v322, 0.25
    %v329 = vmul.f32 %v324, 0.25
    %v330 = vperm.slane %v214, 0
    %v331 = vperm.slane %v215, 0
    %v332 = vadd.f32 %v326, %v330
    %v333 = vadd.f32 %v327, %v330
    %v334 = vadd.f32 %v328, %v331
    %v335 = vadd.f32 %v329, %v331
    %v336 = vsel %vm278, %v332, -inf
    %337 = vmax.xlane.f32.xlu0 %v336
    %v338 = vpop.xlane.xlu0 %337
    %v339 = vsel %vm278, %v333, -inf
    %340 = vmax.xlane.f32.xlu0 %v339
    %v341 = vpop.xlane.xlu0 %340
    %v342 = vsel %vm278, %v334, -inf
    %343 = vmax.xlane.f32.xlu0 %v342
    %v344 = vpop.xlane.xlu0 %343
    %v345 = vsel %vm278, %v335, -inf
    %346 = vmax.xlane.f32.xlu0 %v345
    %v347 = vpop.xlane.xlu0 %346
    %v348 = vsub.f32 %v332, %v338
    %v349 = vsub.f32 %v333, %v341
    %v350 = vsub.f32 %v334, %v344
    %v351 = vsub.f32 %v335, %v347
    %v352 = vmul.f32 %v348, 1.442695
    %v353 = vpow.pop %v352
    %v354 = vmul.f32 %v349, 1.442695
    %v355 = vpow.pop %v354
    %v356 = vmul.f32 %v350, 1.442695
    %v357 = vpow.pop %v356
    %v358 = vmul.f32 %v351, 1.442695
    %v359 = vpow.pop %v358
    %v360 = vsel %vm278, %v353, 0.0
    %361 = vadd.xlane.f32.xlu0 %v360
    %v362 = vpop.xlane.xlu0 %361
    %v363 = vsel %vm278, %v355, 0.0
    %364 = vadd.xlane.f32.xlu0 %v363
    %v365 = vpop.xlane.xlu0 %364
    %v366 = vsel %vm278, %v357, 0.0
    %367 = vadd.xlane.f32.xlu0 %v366
    %v368 = vpop.xlane.xlu0 %367
    %v369 = vsel %vm278, %v359, 0.0
    %370 = vadd.xlane.f32.xlu0 %v369
    %v371 = vpop.xlane.xlu0 %370
    %v372 = vrcp.pop %v362
    %v373 = vrcp.pop %v365
    %v374 = vrcp.pop %v368
    %v375 = vrcp.pop %v371
    %v376 = vmul.f32 %v353, %v372
    %v377 = vmul.f32 %v355, %v373
    %v378 = vmul.f32 %v357, %v374
    %v379 = vmul.f32 %v359, %v375
    %v380 = vpack.c.bf16 %v376, %v376
    %v381 = vpack.c.bf16 %v377, %v377
    %v382 = vpack.c.bf16 %v378, %v378
    %v383 = vpack.c.bf16 %v379, %v379
    %v386 = vunpack.c.l.b16 %v380
    %v387 = vunpack.c.l.b16 %v381
    %v388 = vpack.c.b16 %v387, %v386
    %389 = vrot.lane.b32.xlu0 %v275, 64
    %v390 = vpop.permute.xlu0 %389
    %v393 = vsel %vm278, %v388, 0
    %395 = vmatpush.bf16.msra.mxu0 0
    %396 = vmatpush.bf16.msra.mxu0 0
    %397 = vmatpush.bf16.msra.mxu0 0
    %398 = vmatpush.bf16.msra.mxu0 0
    %399 = vmatpush.bf16.msra.mxu0 0
    %400 = vmatpush.bf16.msra.mxu0 0
    %401 = vmatpush.bf16.msra.mxu0 0
    %402 = vmatpush.bf16.msra.mxu0 %v390
    %403 = vmatmul.bf16.gmra.mxu0 %v393
    %v404 = vpop.f32.mrf.mxu0
    %v405 = vadd.f32 0.0, %v404
    %v406 = vpop.f32.mrf.mxu0
    %v407 = vadd.f32 0.0, %v406
    %408 = vdwg.mxu0
    %v411 = vunpack.c.l.b16 %v382
    %v412 = vunpack.c.l.b16 %v383
    %v413 = vpack.c.b16 %v412, %v411
    %414 = vrot.lane.b32.xlu0 %v303, 64
    %v415 = vpop.permute.xlu0 %414
    %v418 = vsel %vm278, %v413, 0
    %420 = vmatpush.bf16.msra.mxu0 0
    %421 = vmatpush.bf16.msra.mxu0 0
    %422 = vmatpush.bf16.msra.mxu0 0
    %423 = vmatpush.bf16.msra.mxu0 0
    %424 = vmatpush.bf16.msra.mxu0 0
    %425 = vmatpush.bf16.msra.mxu0 0
    %426 = vmatpush.bf16.msra.mxu0 0
    %427 = vmatpush.bf16.msra.mxu0 %v415
    %428 = vmatmul.bf16.gmra.mxu0 %v418
    %v429 = vpop.f32.mrf.mxu0
    %v430 = vadd.f32 0.0, %v429
    %v431 = vpop.f32.mrf.mxu0
    %v432 = vadd.f32 0.0, %v431
    %433 = vdwg.mxu0
    %v434 = vpack.c.bf16 %v407, %v405
    %v435 = vpack.c.bf16 %v432, %v430
    %436 = vrot.lane.b32.xlu0 %v275, 112
    %v437 = vpop.permute.xlu0 %436
    %438 = vrot.lane.b32.xlu0 %v275, 80
    %v439 = vpop.permute.xlu0 %438
    %v441 = vsel %vm278, %v437, 0
    %v444 = vsel %vm278, %v439, 0
    %446 = vmatpush.bf16.xpose.msra.mxu0 0
    %447 = vmatpush.bf16.xpose.msra.mxu0 0
    %448 = vmatpush.bf16.xpose.msra.mxu0 0
    %449 = vmatpush.bf16.xpose.msra.mxu0 0
    %450 = vmatpush.bf16.xpose.msra.mxu0 0
    %451 = vmatpush.bf16.xpose.msra.mxu0 0
    %452 = vmatpush.bf16.xpose.msra.mxu0 0
    %453 = vmatpush.bf16.xpose.msra.mxu0 %v444
    %454 = vmatmul.bf16.gmra.mxu0 %v441
    %v455 = vpop.f32.mrf.mxu0
    %v456 = vadd.f32 0.0, %v455
    %v457 = vpop.f32.mrf.mxu0
    %v458 = vadd.f32 0.0, %v457
    %459 = vdwg.mxu0
    %460 = vrot.lane.b32.xlu0 %v303, 112
    %v461 = vpop.permute.xlu0 %460
    %462 = vrot.lane.b32.xlu0 %v303, 80
    %v463 = vpop.permute.xlu0 %462
    %v465 = vsel %vm278, %v461, 0
    %v468 = vsel %vm278, %v463, 0
    %470 = vmatpush.bf16.xpose.msra.mxu0 0
    %471 = vmatpush.bf16.xpose.msra.mxu0 0
    %472 = vmatpush.bf16.xpose.msra.mxu0 0
    %473 = vmatpush.bf16.xpose.msra.mxu0 0
    %474 = vmatpush.bf16.xpose.msra.mxu0 0
    %475 = vmatpush.bf16.xpose.msra.mxu0 0
    %476 = vmatpush.bf16.xpose.msra.mxu0 0
    %477 = vmatpush.bf16.xpose.msra.mxu0 %v468
    %478 = vmatmul.bf16.gmra.mxu0 %v465
    %v479 = vpop.f32.mrf.mxu0
    %v480 = vadd.f32 0.0, %v479
    %v481 = vpop.f32.mrf.mxu0
    %v482 = vadd.f32 0.0, %v481
    %483 = vdwg.mxu0
    %v484 = vmul.f32 %v456, 0.25
    %v485 = vmul.f32 %v458, 0.25
    %v486 = vmul.f32 %v480, 0.25
    %v487 = vmul.f32 %v482, 0.25
    %v488 = vadd.f32 %v484, %v330
    %v489 = vadd.f32 %v485, %v330
    %v490 = vadd.f32 %v486, %v331
    %v491 = vadd.f32 %v487, %v331
    %v492 = vsel %vm278, %v488, -inf
    %493 = vmax.xlane.f32.xlu0 %v492
    %v494 = vpop.xlane.xlu0 %493
    %v495 = vsel %vm278, %v489, -inf
    %496 = vmax.xlane.f32.xlu0 %v495
    %v497 = vpop.xlane.xlu0 %496
    %v498 = vsel %vm278, %v490, -inf
    %499 = vmax.xlane.f32.xlu0 %v498
    %v500 = vpop.xlane.xlu0 %499
    %v501 = vsel %vm278, %v491, -inf
    %502 = vmax.xlane.f32.xlu0 %v501
    %v503 = vpop.xlane.xlu0 %502
    %v504 = vsub.f32 %v488, %v494
    %v505 = vsub.f32 %v489, %v497
    %v506 = vsub.f32 %v490, %v500
    %v507 = vsub.f32 %v491, %v503
    %v508 = vmul.f32 %v504, 1.442695
    %v509 = vpow.pop %v508
    %v510 = vmul.f32 %v505, 1.442695
    %v511 = vpow.pop %v510
    %v512 = vmul.f32 %v506, 1.442695
    %v513 = vpow.pop %v512
    %v514 = vmul.f32 %v507, 1.442695
    %v515 = vpow.pop %v514
    %v516 = vsel %vm278, %v509, 0.0
    %517 = vadd.xlane.f32.xlu0 %v516
    %v518 = vpop.xlane.xlu0 %517
    %v519 = vsel %vm278, %v511, 0.0
    %520 = vadd.xlane.f32.xlu0 %v519
    %v521 = vpop.xlane.xlu0 %520
    %v522 = vsel %vm278, %v513, 0.0
    %523 = vadd.xlane.f32.xlu0 %v522
    %v524 = vpop.xlane.xlu0 %523
    %v525 = vsel %vm278, %v515, 0.0
    %526 = vadd.xlane.f32.xlu0 %v525
    %v527 = vpop.xlane.xlu0 %526
    %v528 = vrcp.pop %v518
    %v529 = vrcp.pop %v521
    %v530 = vrcp.pop %v524
    %v531 = vrcp.pop %v527
    %v532 = vmul.f32 %v509, %v528
    %v533 = vmul.f32 %v511, %v529
    %v534 = vmul.f32 %v513, %v530
    %v535 = vmul.f32 %v515, %v531
    %v536 = vpack.c.bf16 %v532, %v532
    %v537 = vpack.c.bf16 %v533, %v533
    %v538 = vpack.c.bf16 %v534, %v534
    %v539 = vpack.c.bf16 %v535, %v535
    %v542 = vunpack.c.l.b16 %v536
    %v543 = vunpack.c.l.b16 %v537
    %v544 = vpack.c.b16 %v543, %v542
    %545 = vrot.lane.b32.xlu0 %v275, 48
    %v546 = vpop.permute.xlu0 %545
    %v549 = vsel %vm278, %v544, 0
    %551 = vmatpush.bf16.msra.mxu0 0
    %552 = vmatpush.bf16.msra.mxu0 0
    %553 = vmatpush.bf16.msra.mxu0 0
    %554 = vmatpush.bf16.msra.mxu0 0
    %555 = vmatpush.bf16.msra.mxu0 0
    %556 = vmatpush.bf16.msra.mxu0 0
    %557 = vmatpush.bf16.msra.mxu0 0
    %558 = vmatpush.bf16.msra.mxu0 %v546
    %559 = vmatmul.bf16.gmra.mxu0 %v549
    %v560 = vpop.f32.mrf.mxu0
    %v561 = vadd.f32 0.0, %v560
    %v562 = vpop.f32.mrf.mxu0
    %v563 = vadd.f32 0.0, %v562
    %564 = vdwg.mxu0
    %v567 = vunpack.c.l.b16 %v538
    %v568 = vunpack.c.l.b16 %v539
    %v569 = vpack.c.b16 %v568, %v567
    %570 = vrot.lane.b32.xlu0 %v303, 48
    %v571 = vpop.permute.xlu0 %570
    %v574 = vsel %vm278, %v569, 0
    %576 = vmatpush.bf16.msra.mxu0 0
    %577 = vmatpush.bf16.msra.mxu0 0
    %578 = vmatpush.bf16.msra.mxu0 0
    %579 = vmatpush.bf16.msra.mxu0 0
    %580 = vmatpush.bf16.msra.mxu0 0
    %581 = vmatpush.bf16.msra.mxu0 0
    %582 = vmatpush.bf16.msra.mxu0 0
    %583 = vmatpush.bf16.msra.mxu0 %v571
    %584 = vmatmul.bf16.gmra.mxu0 %v574
    %v585 = vpop.f32.mrf.mxu0
    %v586 = vadd.f32 0.0, %v585
    %v587 = vpop.f32.mrf.mxu0
    %v588 = vadd.f32 0.0, %v587
    %589 = vdwg.mxu0
    %v590 = vpack.c.bf16 %v563, %v561
    %v591 = vpack.c.bf16 %v588, %v586
    %v594 = vunpack.c.l.b16 %v269
    %v595 = vunpack.c.l.b16 %v270
    %v596 = vpack.c.b16 %v595, %v594
    %v599 = vsel %vm278, %v590, 0
    %v602 = vsel %vm278, %v591, 0
    %604 = vmatpush.bf16.msra.mxu0 0
    %605 = vmatpush.bf16.msra.mxu0 0
    %606 = vmatpush.bf16.msra.mxu0 0
    %607 = vmatpush.bf16.msra.mxu0 0
    %608 = vmatpush.bf16.msra.mxu0 0
    %609 = vmatpush.bf16.msra.mxu0 0
    %610 = vmatpush.bf16.msra.mxu0 0
    %611 = vmatpush.bf16.msra.mxu0 %v596
    %612 = vmatmul.bf16.gmra.mxu0 %v599
    %v613 = vpop.f32.mrf.mxu0
    %v614 = vadd.f32 0.0, %v613
    %v615 = vpop.f32.mrf.mxu0
    %v616 = vadd.f32 0.0, %v615
    %617 = vmatmul.bf16.gmra.mxu0 %v602
    %v618 = vpop.f32.mrf.mxu0
    %v619 = vadd.f32 0.0, %v618
    %v620 = vpop.f32.mrf.mxu0
    %v621 = vadd.f32 0.0, %v620
    %622 = vdwg.mxu0
    %v625 = vunpack.c.l.b16 %v267
    %v626 = vunpack.c.l.b16 %v268
    %v627 = vpack.c.b16 %v626, %v625
    %v630 = vsel %vm278, %v434, 0
    %v633 = vsel %vm278, %v435, 0
    %635 = vmatpush.bf16.msra.mxu0 0
    %636 = vmatpush.bf16.msra.mxu0 0
    %637 = vmatpush.bf16.msra.mxu0 0
    %638 = vmatpush.bf16.msra.mxu0 0
    %639 = vmatpush.bf16.msra.mxu0 0
    %640 = vmatpush.bf16.msra.mxu0 0
    %641 = vmatpush.bf16.msra.mxu0 0
    %642 = vmatpush.bf16.msra.mxu0 %v627
    %643 = vmatmul.bf16.gmra.mxu0 %v630
    %v644 = vpop.f32.mrf.mxu0
    %v645 = vadd.f32 %v614, %v644
    %v646 = vpop.f32.mrf.mxu0
    %v647 = vadd.f32 %v616, %v646
    %648 = vmatmul.bf16.gmra.mxu0 %v633
    %v649 = vpop.f32.mrf.mxu0
    %v650 = vadd.f32 %v619, %v649
    %v651 = vpop.f32.mrf.mxu0
    %v652 = vadd.f32 %v621, %v651
    %653 = vdwg.mxu0
    %654 = vrot.lane.b32.xlu0 %v224, 32
    %v655 = vpop.permute.xlu0 %654
    %v657 = vadd.f32 %v645, %v655
    %v658 = vadd.f32 %v647, %v655
    %v659 = vadd.f32 %v650, %v655
    %v660 = vadd.f32 %v652, %v655
    %v661 = vadd.f32 %v210, %v657
    %v662 = vadd.f32 %v211, %v658
    %v663 = vadd.f32 %v212, %v659
    %v664 = vadd.f32 %v213, %v660
    %v665 = vsel %vm108, %v661, 0.0
    %666 = vadd.xlane.f32.xlu0 %v665
    %v667 = vpop.xlane.xlu0 %666
    %v668 = vsel %vm108, %v662, 0.0
    %669 = vadd.xlane.f32.xlu0 %v668
    %v670 = vpop.xlane.xlu0 %669
    %v671 = vsel %vm108, %v663, 0.0
    %672 = vadd.xlane.f32.xlu0 %v671
    %v673 = vpop.xlane.xlu0 %672
    %v674 = vsel %vm108, %v664, 0.0
    %675 = vadd.xlane.f32.xlu0 %v674
    %v676 = vpop.xlane.xlu0 %675
    %v677 = vmul.f32 %v667, %v127
    %v678 = vmul.f32 %v670, %v127
    %v679 = vmul.f32 %v673, %v127
    %v680 = vmul.f32 %v676, %v127
    %v681 = vsub.f32 %v661, %v677
    %v682 = vsub.f32 %v662, %v678
    %v683 = vsub.f32 %v663, %v679
    %v684 = vsub.f32 %v664, %v680
    %v685 = vmul.f32 %v681, %v681
    %v686 = vmul.f32 %v682, %v682
    %v687 = vmul.f32 %v683, %v683
    %v688 = vmul.f32 %v684, %v684
    %v689 = vsel %vm108, %v685, 0.0
    %690 = vadd.xlane.f32.xlu0 %v689
    %v691 = vpop.xlane.xlu0 %690
    %v692 = vsel %vm108, %v686, 0.0
    %693 = vadd.xlane.f32.xlu0 %v692
    %v694 = vpop.xlane.xlu0 %693
    %v695 = vsel %vm108, %v687, 0.0
    %696 = vadd.xlane.f32.xlu0 %v695
    %v697 = vpop.xlane.xlu0 %696
    %v698 = vsel %vm108, %v688, 0.0
    %699 = vadd.xlane.f32.xlu0 %v698
    %v700 = vpop.xlane.xlu0 %699
    %v701 = vmul.f32 %v691, %v127
    %v702 = vmul.f32 %v694, %v127
    %v703 = vmul.f32 %v697, %v127
    %v704 = vmul.f32 %v700, %v127
    %v705 = vadd.f32 %v701, 1e-12
    %v706 = vadd.f32 %v702, 1e-12
    %v707 = vadd.f32 %v703, 1e-12
    %v708 = vadd.f32 %v704, 1e-12
    %v709 = vrsqrt.pop %v705
    %v710 = vmul.f32 %v709, %v705
    %v711 = vmul.f32 %v710, %v709
    %v712 = vmul.f32 0.5, %v711
    %v713 = vsub.f32 1.5, %v712
    %v714 = vmul.f32 %v709, %v713
    %vm715 = vweird.f32 %v705
    %vm716 = vweird.f32 %v709
    %vm717 = vmor %vm715, %vm716
    %v718 = vsel %vm717, %v709, %v714
    %v719 = vrsqrt.pop %v706
    %v720 = vmul.f32 %v719, %v706
    %v721 = vmul.f32 %v720, %v719
    %v722 = vmul.f32 0.5, %v721
    %v723 = vsub.f32 1.5, %v722
    %v724 = vmul.f32 %v719, %v723
    %vm725 = vweird.f32 %v706
    %vm726 = vweird.f32 %v719
    %vm727 = vmor %vm725, %vm726
    %v728 = vsel %vm727, %v719, %v724
    %v729 = vrsqrt.pop %v707
    %v730 = vmul.f32 %v729, %v707
    %v731 = vmul.f32 %v730, %v729
    %v732 = vmul.f32 0.5, %v731
    %v733 = vsub.f32 1.5, %v732
    %v734 = vmul.f32 %v729, %v733
    %vm735 = vweird.f32 %v707
    %vm736 = vweird.f32 %v729
    %vm737 = vmor %vm735, %vm736
    %v738 = vsel %vm737, %v729, %v734
    %v739 = vrsqrt.pop %v708
    %v740 = vmul.f32 %v739, %v708
    %v741 = vmul.f32 %v740, %v739
    %v742 = vmul.f32 0.5, %v741
    %v743 = vsub.f32 1.5, %v742
    %v744 = vmul.f32 %v739, %v743
    %vm745 = vweird.f32 %v708
    %vm746 = vweird.f32 %v739
    %vm747 = vmor %vm745, %vm746
    %v748 = vsel %vm747, %v739, %v744
    %v749 = vmul.f32 %v681, %v718
    %v750 = vmul.f32 %v682, %v728
    %v751 = vmul.f32 %v683, %v738
    %v752 = vmul.f32 %v684, %v748
    %v753 = vrot.slane %v216, 1
    %v754 = vperm.slane %v753, 0
    %v756 = vmul.f32 %v749, %v754
    %v757 = vmul.f32 %v750, %v754
    %v758 = vmul.f32 %v751, %v754
    %v759 = vmul.f32 %v752, %v754
    %760 = vrot.lane.b32.xlu0 %v216, 96
    %v761 = vpop.permute.xlu0 %760
    %v762 = vrot.slane %v761, 1
    %v763 = vperm.slane %v762, 0
    %v765 = vadd.f32 %v756, %v763
    %v766 = vadd.f32 %v757, %v763
    %v767 = vadd.f32 %v758, %v763
    %v768 = vadd.f32 %v759, %v763
    %v769 = vpack.c.bf16 %v766, %v765
    %v770 = vpack.c.bf16 %v768, %v767
    %v771 = vld [vmem:[#allocation7] sm:$0xf]
    %v772 = vld [vmem:[#allocation7 + $0x4] sm:$0xf]
    %v773 = vld [vmem:[#allocation7 + $0x8] sm:$0xf]
    %v774 = vld [vmem:[#allocation7 + $0xc] sm:$0xf]
    %775 = vrot.lane.b32.xlu0 %v216, 64
    %v776 = vpop.permute.xlu0 %775
    %v777 = vrot.slane %v776, 1
    %v778 = vperm.slane %v777, 0
    %v784 = vunpack.c.l.b16 %v771
    %v785 = vunpack.c.l.b16 %v772
    %v786 = vunpack.c.l.b16 %v773
    %v787 = vunpack.c.l.b16 %v774
    %v788 = vpack.c.b16 %v785, %v784
    %v789 = vpack.c.b16 %v787, %v786
    %v793 = vsel %vm108, %v769, 0
    %v796 = vsel %vm108, %v770, 0
    %798 = vmatpush.bf16.msra.mxu0 0
    %799 = vmatpush.bf16.msra.mxu0 0
    %800 = vmatpush.bf16.msra.mxu0 0
    %801 = vmatpush.bf16.msra.mxu0 0
    %802 = vmatpush.bf16.msra.mxu0 0
    %803 = vmatpush.bf16.msra.mxu0 0
    %804 = vmatpush.bf16.msra.mxu0 %v789
    %805 = vmatpush.bf16.msra.mxu0 %v788
    %806 = vmatmul.bf16.gmra.mxu0 %v793
    %v807 = vpop.f32.mrf.mxu0
    %v808 = vadd.f32 %v778, %v807
    %v809 = vpop.f32.mrf.mxu0
    %v810 = vadd.f32 %v778, %v809
    %811 = vmatmul.bf16.gmra.mxu0 %v796
    %v812 = vpop.f32.mrf.mxu0
    %v813 = vadd.f32 %v778, %v812
    %v814 = vpop.f32.mrf.mxu0
    %v815 = vadd.f32 %v778, %v814
    %816 = vdwg.mxu0
    %v817 = vmul.f32 %v808, 0.5
    %v818 = vmul.f32 %v810, 0.5
    %v819 = vmul.f32 %v813, 0.5
    %v820 = vmul.f32 %v815, 0.5
    %v821 = vmul.f32 %v808, 0.044715
    %v822 = vmul.f32 %v810, 0.044715
    %v823 = vmul.f32 %v813, 0.044715
    %v824 = vmul.f32 %v815, 0.044715
    %v825 = vmul.f32 %v821, %v808
    %v826 = vmul.f32 %v822, %v810
    %v827 = vmul.f32 %v823, %v813
    %v828 = vmul.f32 %v824, %v815
    %v829 = vmul.f32 %v825, %v808
    %v830 = vmul.f32 %v826, %v810
    %v831 = vmul.f32 %v827, %v813
    %v832 = vmul.f32 %v828, %v815
    %v833 = vadd.f32 %v808, %v829
    %v834 = vadd.f32 %v810, %v830
    %v835 = vadd.f32 %v813, %v831
    %v836 = vadd.f32 %v815, %v832
    %v837 = vmul.f32 %v833, 0.7978846
    %v838 = vmul.f32 %v834, 0.7978846
    %v839 = vmul.f32 %v835, 0.7978846
    %v840 = vmul.f32 %v836, 0.7978846
    %v841 = vtanh.pop %v837
    %v842 = vtanh.pop %v838
    %v843 = vtanh.pop %v839
    %v844 = vtanh.pop %v840
    %v845 = vadd.f32 %v841, 1.0
    %v846 = vadd.f32 %v842, 1.0
    %v847 = vadd.f32 %v843, 1.0
    %v848 = vadd.f32 %v844, 1.0
    %v849 = vmul.f32 %v817, %v845
    %v850 = vmul.f32 %v818, %v846
    %v851 = vmul.f32 %v819, %v847
    %v852 = vmul.f32 %v820, %v848
    %v853 = vpack.c.bf16 %v850, %v849
    %v854 = vpack.c.bf16 %v852, %v851
    %v855 = vld [vmem:[%s6] sm:$0xf]
    %v856 = vld [vmem:[%s6 + $0x4] sm:$0xf]
    %v857 = vld [vmem:[%s6 + $0x8] sm:$0xf]
    %v858 = vld [vmem:[%s6 + $0xc] sm:$0xf]
    %v859 = vld [vmem:[%s6 + $0x10] sm:$0xf]
    %v860 = vld [vmem:[%s6 + $0x14] sm:$0xf]
    %v861 = vld [vmem:[%s6 + $0x18] sm:$0xf]
    %v862 = vld [vmem:[%s6 + $0x1c] sm:$0xf]
    %v863 = vrot.slane %v216, 2
    %v864 = vperm.slane %v863, 0
    %v874 = vunpack.c.l.b16 %v855
    %v875 = vunpack.c.l.b16 %v856
    %v876 = vunpack.c.l.b16 %v857
    %v877 = vunpack.c.l.b16 %v858
    %v878 = vunpack.c.l.b16 %v859
    %v879 = vunpack.c.l.b16 %v860
    %v880 = vunpack.c.l.b16 %v861
    %v881 = vunpack.c.l.b16 %v862
    %v882 = vpack.c.b16 %v875, %v874
    %v883 = vpack.c.b16 %v877, %v876
    %v884 = vpack.c.b16 %v879, %v878
    %v885 = vpack.c.b16 %v881, %v880
    %vm890 = vcmask 523264
    %v892 = vsel %vm890, %v853, 0
    %v895 = vsel %vm890, %v854, 0
    %897 = vmatpush.bf16.msra.mxu0 0
    %898 = vmatpush.bf16.msra.mxu0 0
    %899 = vmatpush.bf16.msra.mxu0 0
    %900 = vmatpush.bf16.msra.mxu0 0
    %901 = vmatpush.bf16.msra.mxu0 %v885
    %902 = vmatpush.bf16.msra.mxu0 %v884
    %903 = vmatpush.bf16.msra.mxu0 %v883
    %904 = vmatpush.bf16.msra.mxu0 %v882
    %905 = vmatmul.bf16.gmra.mxu0 %v892
    %v906 = vpop.f32.mrf.mxu0
    %v907 = vadd.f32 %v864, %v906
    %v908 = vpop.f32.mrf.mxu0
    %v909 = vadd.f32 %v864, %v908
    %910 = vmatmul.bf16.gmra.mxu0 %v895
    %v911 = vpop.f32.mrf.mxu0
    %v912 = vadd.f32 %v864, %v911
    %v913 = vpop.f32.mrf.mxu0
    %v914 = vadd.f32 %v864, %v913
    %915 = vdwg.mxu0
    %v916 = vadd.f32 %v765, %v907
    %v917 = vadd.f32 %v766, %v909
    %v918 = vadd.f32 %v767, %v912
    %v919 = vadd.f32 %v768, %v914
    %v920 = vsel %vm108, %v916, 0.0
    %921 = vadd.xlane.f32.xlu0 %v920
    %v922 = vpop.xlane.xlu0 %921
    %v923 = vsel %vm108, %v917, 0.0
    %924 = vadd.xlane.f32.xlu0 %v923
    %v925 = vpop.xlane.xlu0 %924
    %v926 = vsel %vm108, %v918, 0.0
    %927 = vadd.xlane.f32.xlu0 %v926
    %v928 = vpop.xlane.xlu0 %927
    %v929 = vsel %vm108, %v919, 0.0
    %930 = vadd.xlane.f32.xlu0 %v929
    %v931 = vpop.xlane.xlu0 %930
    %v932 = vmul.f32 %v922, %v127
    %v933 = vmul.f32 %v925, %v127
    %v934 = vmul.f32 %v928, %v127
    %v935 = vmul.f32 %v931, %v127
    %v936 = vsub.f32 %v916, %v932
    %v937 = vsub.f32 %v917, %v933
    %v938 = vsub.f32 %v918, %v934
    %v939 = vsub.f32 %v919, %v935
    %v940 = vmul.f32 %v936, %v936
    %v941 = vmul.f32 %v937, %v937
    %v942 = vmul.f32 %v938, %v938
    %v943 = vmul.f32 %v939, %v939
    %v944 = vsel %vm108, %v940, 0.0
    %945 = vadd.xlane.f32.xlu0 %v944
    %v946 = vpop.xlane.xlu0 %945
    %v947 = vsel %vm108, %v941, 0.0
    %948 = vadd.xlane.f32.xlu0 %v947
    %v949 = vpop.xlane.xlu0 %948
    %v950 = vsel %vm108, %v942, 0.0
    %951 = vadd.xlane.f32.xlu0 %v950
    %v952 = vpop.xlane.xlu0 %951
    %v953 = vsel %vm108, %v943, 0.0
    %954 = vadd.xlane.f32.xlu0 %v953
    %v955 = vpop.xlane.xlu0 %954
    %v956 = vmul.f32 %v946, %v127
    %v957 = vmul.f32 %v949, %v127
    %v958 = vmul.f32 %v952, %v127
    %v959 = vmul.f32 %v955, %v127
    %v960 = vadd.f32 %v956, 1e-12
    %v961 = vadd.f32 %v957, 1e-12
    %v962 = vadd.f32 %v958, 1e-12
    %v963 = vadd.f32 %v959, 1e-12
    %v964 = vrsqrt.pop %v960
    %v965 = vmul.f32 %v964, %v960
    %v966 = vmul.f32 %v965, %v964
    %v967 = vmul.f32 0.5, %v966
    %v968 = vsub.f32 1.5, %v967
    %v969 = vmul.f32 %v964, %v968
    %vm970 = vweird.f32 %v960
    %vm971 = vweird.f32 %v964
    %vm972 = vmor %vm970, %vm971
    %v973 = vsel %vm972, %v964, %v969
    %v974 = vrsqrt.pop %v961
    %v975 = vmul.f32 %v974, %v961
    %v976 = vmul.f32 %v975, %v974
    %v977 = vmul.f32 0.5, %v976
    %v978 = vsub.f32 1.5, %v977
    %v979 = vmul.f32 %v974, %v978
    %vm980 = vweird.f32 %v961
    %vm981 = vweird.f32 %v974
    %vm982 = vmor %vm980, %vm981
    %v983 = vsel %vm982, %v974, %v979
    %v984 = vrsqrt.pop %v962
    %v985 = vmul.f32 %v984, %v962
    %v986 = vmul.f32 %v985, %v984
    %v987 = vmul.f32 0.5, %v986
    %v988 = vsub.f32 1.5, %v987
    %v989 = vmul.f32 %v984, %v988
    %vm990 = vweird.f32 %v962
    %vm991 = vweird.f32 %v984
    %vm992 = vmor %vm990, %vm991
    %v993 = vsel %vm992, %v984, %v989
    %v994 = vrsqrt.pop %v963
    %v995 = vmul.f32 %v994, %v963
    %v996 = vmul.f32 %v995, %v994
    %v997 = vmul.f32 0.5, %v996
    %v998 = vsub.f32 1.5, %v997
    %v999 = vmul.f32 %v994, %v998
    %vm1000 = vweird.f32 %v963
    %vm1001 = vweird.f32 %v994
    %vm1002 = vmor %vm1000, %vm1001
    %v1003 = vsel %vm1002, %v994, %v999
    %v1004 = vmul.f32 %v936, %v973
    %v1005 = vmul.f32 %v937, %v983
    %v1006 = vmul.f32 %v938, %v993
    %v1007 = vmul.f32 %v939, %v1003
    %v1008 = vrot.slane %v761, 2
    %v1009 = vperm.slane %v1008, 0
    %v1011 = vmul.f32 %v1004, %v1009
    %v1012 = vmul.f32 %v1005, %v1009
    %v1013 = vmul.f32 %v1006, %v1009
    %v1014 = vmul.f32 %v1007, %v1009
    %v1015 = vrot.slane %v776, 2
    %v1016 = vperm.slane %v1015, 0
    %v1018 = vadd.f32 %v1011, %v1016
    %v1019 = vadd.f32 %v1012, %v1016
    %v1020 = vadd.f32 %v1013, %v1016
    %v1021 = vadd.f32 %v1014, %v1016
    %s1022 = scalar_lea.vmem [#allocation8], 1
    %v1023 = vld [vmem:[%s1022] ss:$2 sm:$0x7]
    %v1024 = vpack.c.bf16 %v1019, %v1018
    %v1025 = vpack.c.bf16 %v1021, %v1020
    %s1026 = scalar_lea.vmem %s3, 16
    %v1027 = vld [vmem:[%s1026] sm:$0xf]
    %v1028 = vld [vmem:[%s1026 + $0x4] sm:$0xf]
    %v1029 = vld [vmem:[%s1026 + $0x8] sm:$0xf]
    %v1030 = vld [vmem:[%s1026 + $0xc] sm:$0xf]
    %v1032 = vperm.slane %v1023, 0
    %v1038 = vunpack.c.l.b16 %v1027
    %v1039 = vunpack.c.l.b16 %v1028
    %v1040 = vunpack.c.l.b16 %v1029
    %v1041 = vunpack.c.l.b16 %v1030
    %v1042 = vpack.c.b16 %v1039, %v1038
    %v1043 = vpack.c.b16 %v1041, %v1040
    %v1047 = vsel %vm108, %v1024, 0
    %v1050 = vsel %vm108, %v1025, 0
    %1052 = vmatpush.bf16.msra.mxu0 0
    %1053 = vmatpush.bf16.msra.mxu0 0
    %1054 = vmatpush.bf16.msra.mxu0 0
    %1055 = vmatpush.bf16.msra.mxu0 0
    %1056 = vmatpush.bf16.msra.mxu0 0
    %1057 = vmatpush.bf16.msra.mxu0 0
    %1058 = vmatpush.bf16.msra.mxu0 %v1043
    %1059 = vmatpush.bf16.msra.mxu0 %v1042
    %1060 = vmatmul.bf16.gmra.mxu0 %v1047
    %v1061 = vpop.f32.mrf.mxu0
    %v1062 = vadd.f32 %v1032, %v1061
    %v1063 = vpop.f32.mrf.mxu0
    %v1064 = vadd.f32 %v1032, %v1063
    %1065 = vmatmul.bf16.gmra.mxu0 %v1050
    %v1066 = vpop.f32.mrf.mxu0
    %v1067 = vadd.f32 %v1032, %v1066
    %v1068 = vpop.f32.mrf.mxu0
    %v1069 = vadd.f32 %v1032, %v1068
    %1070 = vdwg.mxu0
    %v1071 = vpack.c.bf16 %v1062, %v1062
    %v1072 = vpack.c.bf16 %v1064, %v1064
    %v1073 = vpack.c.bf16 %v1067, %v1067
    %v1074 = vpack.c.bf16 %v1069, %v1069
    %s1075 = scalar_lea.vmem %s4, 16
    %v1076 = vld [vmem:[%s1075] sm:$0xf]
    %v1077 = vld [vmem:[%s1075 + $0x4] sm:$0xf]
    %v1078 = vld [vmem:[%s1075 + $0x8] sm:$0xf]
    %v1079 = vld [vmem:[%s1075 + $0xc] sm:$0xf]
    %v1082 = vunpack.c.l.b16 %v1071
    %v1083 = vunpack.c.l.b16 %v1072
    %v1084 = vpack.c.b16 %v1083, %v1082
    %1085 = vrot.lane.b32.xlu0 %v1084, 96
    %v1086 = vpop.permute.xlu0 %1085
    %v1088 = vsel %vm278, %v1084, 0
    %v1091 = vsel %vm278, %v1086, 0
    %1093 = vmatpush.bf16.xpose.msra.mxu0 0
    %1094 = vmatpush.bf16.xpose.msra.mxu0 0
    %1095 = vmatpush.bf16.xpose.msra.mxu0 0
    %1096 = vmatpush.bf16.xpose.msra.mxu0 0
    %1097 = vmatpush.bf16.xpose.msra.mxu0 0
    %1098 = vmatpush.bf16.xpose.msra.mxu0 0
    %1099 = vmatpush.bf16.xpose.msra.mxu0 0
    %1100 = vmatpush.bf16.xpose.msra.mxu0 %v1091
    %1101 = vmatmul.bf16.gmra.mxu0 %v1088
    %v1102 = vpop.f32.mrf.mxu0
    %v1103 = vadd.f32 0.0, %v1102
    %v1104 = vpop.f32.mrf.mxu0
    %v1105 = vadd.f32 0.0, %v1104
    %1106 = vdwg.mxu0
    %v1109 = vunpack.c.l.b16 %v1073
    %v1110 = vunpack.c.l.b16 %v1074
    %v1111 = vpack.c.b16 %v1110, %v1109
    %1112 = vrot.lane.b32.xlu0 %v1111, 96
    %v1113 = vpop.permute.xlu0 %1112
    %v1115 = vsel %vm278, %v1111, 0
    %v1118 = vsel %vm278, %v1113, 0
    %1120 = vmatpush.bf16.xpose.msra.mxu0 0
    %1121 = vmatpush.bf16.xpose.msra.mxu0 0
    %1122 = vmatpush.bf16.xpose.msra.mxu0 0
    %1123 = vmatpush.bf16.xpose.msra.mxu0 0
    %1124 = vmatpush.bf16.xpose.msra.mxu0 0
    %1125 = vmatpush.bf16.xpose.msra.mxu0 0
    %1126 = vmatpush.bf16.xpose.msra.mxu0 0
    %1127 = vmatpush.bf16.xpose.msra.mxu0 %v1118
    %1128 = vmatmul.bf16.gmra.mxu0 %v1115
    %v1129 = vpop.f32.mrf.mxu0
    %v1130 = vadd.f32 0.0, %v1129
    %v1131 = vpop.f32.mrf.mxu0
    %v1132 = vadd.f32 0.0, %v1131
    %1133 = vdwg.mxu0
    %v1134 = vmul.f32 %v1103, 0.25
    %v1135 = vmul.f32 %v1105, 0.25
    %v1136 = vmul.f32 %v1130, 0.25
    %v1137 = vmul.f32 %v1132, 0.25
    %v1138 = vadd.f32 %v1134, %v330
    %v1139 = vadd.f32 %v1135, %v330
    %v1140 = vadd.f32 %v1136, %v331
    %v1141 = vadd.f32 %v1137, %v331
    %v1142 = vsel %vm278, %v1138, -inf
    %1143 = vmax.xlane.f32.xlu0 %v1142
    %v1144 = vpop.xlane.xlu0 %1143
    %v1145 = vsel %vm278, %v1139, -inf
    %1146 = vmax.xlane.f32.xlu0 %v1145
    %v1147 = vpop.xlane.xlu0 %1146
    %v1148 = vsel %vm278, %v1140, -inf
    %1149 = vmax.xlane.f32.xlu0 %v1148
    %v1150 = vpop.xlane.xlu0 %1149
    %v1151 = vsel %vm278, %v1141, -inf
    %1152 = vmax.xlane.f32.xlu0 %v1151
    %v1153 = vpop.xlane.xlu0 %1152
    %v1154 = vsub.f32 %v1138, %v1144
    %v1155 = vsub.f32 %v1139, %v1147
    %v1156 = vsub.f32 %v1140, %v1150
    %v1157 = vsub.f32 %v1141, %v1153
    %v1158 = vmul.f32 %v1154, 1.442695
    %v1159 = vpow.pop %v1158
    %v1160 = vmul.f32 %v1155, 1.442695
    %v1161 = vpow.pop %v1160
    %v1162 = vmul.f32 %v1156, 1.442695
    %v1163 = vpow.pop %v1162
    %v1164 = vmul.f32 %v1157, 1.442695
    %v1165 = vpow.pop %v1164
    %v1166 = vsel %vm278, %v1159, 0.0
    %1167 = vadd.xlane.f32.xlu0 %v1166
    %v1168 = vpop.xlane.xlu0 %1167
    %v1169 = vsel %vm278, %v1161, 0.0
    %1170 = vadd.xlane.f32.xlu0 %v1169
    %v1171 = vpop.xlane.xlu0 %1170
    %v1172 = vsel %vm278, %v1163, 0.0
    %1173 = vadd.xlane.f32.xlu0 %v1172
    %v1174 = vpop.xlane.xlu0 %1173
    %v1175 = vsel %vm278, %v1165, 0.0
    %1176 = vadd.xlane.f32.xlu0 %v1175
    %v1177 = vpop.xlane.xlu0 %1176
    %v1178 = vrcp.pop %v1168
    %v1179 = vrcp.pop %v1171
    %v1180 = vrcp.pop %v1174
    %v1181 = vrcp.pop %v1177
    %v1182 = vmul.f32 %v1159, %v1178
    %v1183 = vmul.f32 %v1161, %v1179
    %v1184 = vmul.f32 %v1163, %v1180
    %v1185 = vmul.f32 %v1165, %v1181
    %v1186 = vpack.c.bf16 %v1182, %v1182
    %v1187 = vpack.c.bf16 %v1183, %v1183
    %v1188 = vpack.c.bf16 %v1184, %v1184
    %v1189 = vpack.c.bf16 %v1185, %v1185
    %v1192 = vunpack.c.l.b16 %v1186
    %v1193 = vunpack.c.l.b16 %v1187
    %v1194 = vpack.c.b16 %v1193, %v1192
    %1195 = vrot.lane.b32.xlu0 %v1084, 64
    %v1196 = vpop.permute.xlu0 %1195
    %v1199 = vsel %vm278, %v1194, 0
    %1201 = vmatpush.bf16.msra.mxu0 0
    %1202 = vmatpush.bf16.msra.mxu0 0
    %1203 = vmatpush.bf16.msra.mxu0 0
    %1204 = vmatpush.bf16.msra.mxu0 0
    %1205 = vmatpush.bf16.msra.mxu0 0
    %1206 = vmatpush.bf16.msra.mxu0 0
    %1207 = vmatpush.bf16.msra.mxu0 0
    %1208 = vmatpush.bf16.msra.mxu0 %v1196
    %1209 = vmatmul.bf16.gmra.mxu0 %v1199
    %v1210 = vpop.f32.mrf.mxu0
    %v1211 = vadd.f32 0.0, %v1210
    %v1212 = vpop.f32.mrf.mxu0
    %v1213 = vadd.f32 0.0, %v1212
    %1214 = vdwg.mxu0
    %v1217 = vunpack.c.l.b16 %v1188
    %v1218 = vunpack.c.l.b16 %v1189
    %v1219 = vpack.c.b16 %v1218, %v1217
    %1220 = vrot.lane.b32.xlu0 %v1111, 64
    %v1221 = vpop.permute.xlu0 %1220
    %v1224 = vsel %vm278, %v1219, 0
    %1226 = vmatpush.bf16.msra.mxu0 0
    %1227 = vmatpush.bf16.msra.mxu0 0
    %1228 = vmatpush.bf16.msra.mxu0 0
    %1229 = vmatpush.bf16.msra.mxu0 0
    %1230 = vmatpush.bf16.msra.mxu0 0
    %1231 = vmatpush.bf16.msra.mxu0 0
    %1232 = vmatpush.bf16.msra.mxu0 0
    %1233 = vmatpush.bf16.msra.mxu0 %v1221
    %1234 = vmatmul.bf16.gmra.mxu0 %v1224
    %v1235 = vpop.f32.mrf.mxu0
    %v1236 = vadd.f32 0.0, %v1235
    %v1237 = vpop.f32.mrf.mxu0
    %v1238 = vadd.f32 0.0, %v1237
    %1239 = vdwg.mxu0
    %v1240 = vpack.c.bf16 %v1213, %v1211
    %v1241 = vpack.c.bf16 %v1238, %v1236
    %1242 = vrot.lane.b32.xlu0 %v1084, 112
    %v1243 = vpop.permute.xlu0 %1242
    %1244 = vrot.lane.b32.xlu0 %v1084, 80
    %v1245 = vpop.permute.xlu0 %1244
    %v1247 = vsel %vm278, %v1243, 0
    %v1250 = vsel %vm278, %v1245, 0
    %1252 = vmatpush.bf16.xpose.msra.mxu0 0
    %1253 = vmatpush.bf16.xpose.msra.mxu0 0
    %1254 = vmatpush.bf16.xpose.msra.mxu0 0
    %1255 = vmatpush.bf16.xpose.msra.mxu0 0
    %1256 = vmatpush.bf16.xpose.msra.mxu0 0
    %1257 = vmatpush.bf16.xpose.msra.mxu0 0
    %1258 = vmatpush.bf16.xpose.msra.mxu0 0
    %1259 = vmatpush.bf16.xpose.msra.mxu0 %v1250
    %1260 = vmatmul.bf16.gmra.mxu0 %v1247
    %v1261 = vpop.f32.mrf.mxu0
    %v1262 = vadd.f32 0.0, %v1261
    %v1263 = vpop.f32.mrf.mxu0
    %v1264 = vadd.f32 0.0, %v1263
    %1265 = vdwg.mxu0
    %1266 = vrot.lane.b32.xlu0 %v1111, 112
    %v1267 = vpop.permute.xlu0 %1266
    %1268 = vrot.lane.b32.xlu0 %v1111, 80
    %v1269 = vpop.permute.xlu0 %1268
    %v1271 = vsel %vm278, %v1267, 0
    %v1274 = vsel %vm278, %v1269, 0
    %1276 = vmatpush.bf16.xpose.msra.mxu0 0
    %1277 = vmatpush.bf16.xpose.msra.mxu0 0
    %1278 = vmatpush.bf16.xpose.msra.mxu0 0
    %1279 = vmatpush.bf16.xpose.msra.mxu0 0
    %1280 = vmatpush.bf16.xpose.msra.mxu0 0
    %1281 = vmatpush.bf16.xpose.msra.mxu0 0
    %1282 = vmatpush.bf16.xpose.msra.mxu0 0
    %1283 = vmatpush.bf16.xpose.msra.mxu0 %v1274
    %1284 = vmatmul.bf16.gmra.mxu0 %v1271
    %v1285 = vpop.f32.mrf.mxu0
    %v1286 = vadd.f32 0.0, %v1285
    %v1287 = vpop.f32.mrf.mxu0
    %v1288 = vadd.f32 0.0, %v1287
    %1289 = vdwg.mxu0
    %v1290 = vmul.f32 %v1262, 0.25
    %v1291 = vmul.f32 %v1264, 0.25
    %v1292 = vmul.f32 %v1286, 0.25
    %v1293 = vmul.f32 %v1288, 0.25
    %v1294 = vadd.f32 %v1290, %v330
    %v1295 = vadd.f32 %v1291, %v330
    %v1296 = vadd.f32 %v1292, %v331
    %v1297 = vadd.f32 %v1293, %v331
    %v1298 = vsel %vm278, %v1294, -inf
    %1299 = vmax.xlane.f32.xlu0 %v1298
    %v1300 = vpop.xlane.xlu0 %1299
    %v1301 = vsel %vm278, %v1295, -inf
    %1302 = vmax.xlane.f32.xlu0 %v1301
    %v1303 = vpop.xlane.xlu0 %1302
    %v1304 = vsel %vm278, %v1296, -inf
    %1305 = vmax.xlane.f32.xlu0 %v1304
    %v1306 = vpop.xlane.xlu0 %1305
    %v1307 = vsel %vm278, %v1297, -inf
    %1308 = vmax.xlane.f32.xlu0 %v1307
    %v1309 = vpop.xlane.xlu0 %1308
    %v1310 = vsub.f32 %v1294, %v1300
    %v1311 = vsub.f32 %v1295, %v1303
    %v1312 = vsub.f32 %v1296, %v1306
    %v1313 = vsub.f32 %v1297, %v1309
    %v1314 = vmul.f32 %v1310, 1.442695
    %v1315 = vpow.pop %v1314
    %v1316 = vmul.f32 %v1311, 1.442695
    %v1317 = vpow.pop %v1316
    %v1318 = vmul.f32 %v1312, 1.442695
    %v1319 = vpow.pop %v1318
    %v1320 = vmul.f32 %v1313, 1.442695
    %v1321 = vpow.pop %v1320
    %v1322 = vsel %vm278, %v1315, 0.0
    %1323 = vadd.xlane.f32.xlu0 %v1322
    %v1324 = vpop.xlane.xlu0 %1323
    %v1325 = vsel %vm278, %v1317, 0.0
    %1326 = vadd.xlane.f32.xlu0 %v1325
    %v1327 = vpop.xlane.xlu0 %1326
    %v1328 = vsel %vm278, %v1319, 0.0
    %1329 = vadd.xlane.f32.xlu0 %v1328
    %v1330 = vpop.xlane.xlu0 %1329
    %v1331 = vsel %vm278, %v1321, 0.0
    %1332 = vadd.xlane.f32.xlu0 %v1331
    %v1333 = vpop.xlane.xlu0 %1332
    %v1334 = vrcp.pop %v1324
    %v1335 = vrcp.pop %v1327
    %v1336 = vrcp.pop %v1330
    %v1337 = vrcp.pop %v1333
    %v1338 = vmul.f32 %v1315, %v1334
    %v1339 = vmul.f32 %v1317, %v1335
    %v1340 = vmul.f32 %v1319, %v1336
    %v1341 = vmul.f32 %v1321, %v1337
    %v1342 = vpack.c.bf16 %v1338, %v1338
    %v1343 = vpack.c.bf16 %v1339, %v1339
    %v1344 = vpack.c.bf16 %v1340, %v1340
    %v1345 = vpack.c.bf16 %v1341, %v1341
    %v1348 = vunpack.c.l.b16 %v1342
    %v1349 = vunpack.c.l.b16 %v1343
    %v1350 = vpack.c.b16 %v1349, %v1348
    %1351 = vrot.lane.b32.xlu0 %v1084, 48
    %v1352 = vpop.permute.xlu0 %1351
    %v1355 = vsel %vm278, %v1350, 0
    %1357 = vmatpush.bf16.msra.mxu0 0
    %1358 = vmatpush.bf16.msra.mxu0 0
    %1359 = vmatpush.bf16.msra.mxu0 0
    %1360 = vmatpush.bf16.msra.mxu0 0
    %1361 = vmatpush.bf16.msra.mxu0 0
    %1362 = vmatpush.bf16.msra.mxu0 0
    %1363 = vmatpush.bf16.msra.mxu0 0
    %1364 = vmatpush.bf16.msra.mxu0 %v1352
    %1365 = vmatmul.bf16.gmra.mxu0 %v1355
    %v1366 = vpop.f32.mrf.mxu0
    %v1367 = vadd.f32 0.0, %v1366
    %v1368 = vpop.f32.mrf.mxu0
    %v1369 = vadd.f32 0.0, %v1368
    %1370 = vdwg.mxu0
    %v1373 = vunpack.c.l.b16 %v1344
    %v1374 = vunpack.c.l.b16 %v1345
    %v1375 = vpack.c.b16 %v1374, %v1373
    %1376 = vrot.lane.b32.xlu0 %v1111, 48
    %v1377 = vpop.permute.xlu0 %1376
    %v1380 = vsel %vm278, %v1375, 0
    %1382 = vmatpush.bf16.msra.mxu0 0
    %1383 = vmatpush.bf16.msra.mxu0 0
    %1384 = vmatpush.bf16.msra.mxu0 0
    %1385 = vmatpush.bf16.msra.mxu0 0
    %1386 = vmatpush.bf16.msra.mxu0 0
    %1387 = vmatpush.bf16.msra.mxu0 0
    %1388 = vmatpush.bf16.msra.mxu0 0
    %1389 = vmatpush.bf16.msra.mxu0 %v1377
    %1390 = vmatmul.bf16.gmra.mxu0 %v1380
    %v1391 = vpop.f32.mrf.mxu0
    %v1392 = vadd.f32 0.0, %v1391
    %v1393 = vpop.f32.mrf.mxu0
    %v1394 = vadd.f32 0.0, %v1393
    %1395 = vdwg.mxu0
    %v1396 = vpack.c.bf16 %v1369, %v1367
    %v1397 = vpack.c.bf16 %v1394, %v1392
    %v1400 = vunpack.c.l.b16 %v1078
    %v1401 = vunpack.c.l.b16 %v1079
    %v1402 = vpack.c.b16 %v1401, %v1400
    %v1405 = vsel %vm278, %v1396, 0
    %v1408 = vsel %vm278, %v1397, 0
    %1410 = vmatpush.bf16.msra.mxu0 0
    %1411 = vmatpush.bf16.msra.mxu0 0
    %1412 = vmatpush.bf16.msra.mxu0 0
    %1413 = vmatpush.bf16.msra.mxu0 0
    %1414 = vmatpush.bf16.msra.mxu0 0
    %1415 = vmatpush.bf16.msra.mxu0 0
    %1416 = vmatpush.bf16.msra.mxu0 0
    %1417 = vmatpush.bf16.msra.mxu0 %v1402
    %1418 = vmatmul.bf16.gmra.mxu0 %v1405
    %v1419 = vpop.f32.mrf.mxu0
    %v1420 = vadd.f32 0.0, %v1419
    %v1421 = vpop.f32.mrf.mxu0
    %v1422 = vadd.f32 0.0, %v1421
    %1423 = vmatmul.bf16.gmra.mxu0 %v1408
    %v1424 = vpop.f32.mrf.mxu0
    %v1425 = vadd.f32 0.0, %v1424
    %v1426 = vpop.f32.mrf.mxu0
    %v1427 = vadd.f32 0.0, %v1426
    %1428 = vdwg.mxu0
    %v1431 = vunpack.c.l.b16 %v1076
    %v1432 = vunpack.c.l.b16 %v1077
    %v1433 = vpack.c.b16 %v1432, %v1431
    %v1436 = vsel %vm278, %v1240, 0
    %v1439 = vsel %vm278, %v1241, 0
    %1441 = vmatpush.bf16.msra.mxu0 0
    %1442 = vmatpush.bf16.msra.mxu0 0
    %1443 = vmatpush.bf16.msra.mxu0 0
    %1444 = vmatpush.bf16.msra.mxu0 0
    %1445 = vmatpush.bf16.msra.mxu0 0
    %1446 = vmatpush.bf16.msra.mxu0 0
    %1447 = vmatpush.bf16.msra.mxu0 0
    %1448 = vmatpush.bf16.msra.mxu0 %v1433
    %1449 = vmatmul.bf16.gmra.mxu0 %v1436
    %v1450 = vpop.f32.mrf.mxu0
    %v1451 = vadd.f32 %v1420, %v1450
    %v1452 = vpop.f32.mrf.mxu0
    %v1453 = vadd.f32 %v1422, %v1452
    %1454 = vmatmul.bf16.gmra.mxu0 %v1439
    %v1455 = vpop.f32.mrf.mxu0
    %v1456 = vadd.f32 %v1425, %v1455
    %v1457 = vpop.f32.mrf.mxu0
    %v1458 = vadd.f32 %v1427, %v1457
    %1459 = vdwg.mxu0
    %1460 = vrot.lane.b32.xlu0 %v1032, 32
    %v1461 = vpop.permute.xlu0 %1460
    %v1463 = vadd.f32 %v1451, %v1461
    %v1464 = vadd.f32 %v1453, %v1461
    %v1465 = vadd.f32 %v1456, %v1461
    %v1466 = vadd.f32 %v1458, %v1461
    %v1467 = vadd.f32 %v1018, %v1463
    %v1468 = vadd.f32 %v1019, %v1464
    %v1469 = vadd.f32 %v1020, %v1465
    %v1470 = vadd.f32 %v1021, %v1466
    %v1471 = vsel %vm108, %v1467, 0.0
    %1472 = vadd.xlane.f32.xlu0 %v1471
    %v1473 = vpop.xlane.xlu0 %1472
    %v1474 = vsel %vm108, %v1468, 0.0
    %1475 = vadd.xlane.f32.xlu0 %v1474
    %v1476 = vpop.xlane.xlu0 %1475
    %v1477 = vsel %vm108, %v1469, 0.0
    %1478 = vadd.xlane.f32.xlu0 %v1477
    %v1479 = vpop.xlane.xlu0 %1478
    %v1480 = vsel %vm108, %v1470, 0.0
    %1481 = vadd.xlane.f32.xlu0 %v1480
    %v1482 = vpop.xlane.xlu0 %1481
    %v1483 = vmul.f32 %v1473, %v127
    %v1484 = vmul.f32 %v1476, %v127
    %v1485 = vmul.f32 %v1479, %v127
    %v1486 = vmul.f32 %v1482, %v127
    %v1487 = vsub.f32 %v1467, %v1483
    %v1488 = vsub.f32 %v1468, %v1484
    %v1489 = vsub.f32 %v1469, %v1485
    %v1490 = vsub.f32 %v1470, %v1486
    %v1491 = vmul.f32 %v1487, %v1487
    %v1492 = vmul.f32 %v1488, %v1488
    %v1493 = vmul.f32 %v1489, %v1489
    %v1494 = vmul.f32 %v1490, %v1490
    %v1495 = vsel %vm108, %v1491, 0.0
    %1496 = vadd.xlane.f32.xlu0 %v1495
    %v1497 = vpop.xlane.xlu0 %1496
    %v1498 = vsel %vm108, %v1492, 0.0
    %1499 = vadd.xlane.f32.xlu0 %v1498
    %v1500 = vpop.xlane.xlu0 %1499
    %v1501 = vsel %vm108, %v1493, 0.0
    %1502 = vadd.xlane.f32.xlu0 %v1501
    %v1503 = vpop.xlane.xlu0 %1502
    %v1504 = vsel %vm108, %v1494, 0.0
    %1505 = vadd.xlane.f32.xlu0 %v1504
    %v1506 = vpop.xlane.xlu0 %1505
    %v1507 = vmul.f32 %v1497, %v127
    %v1508 = vmul.f32 %v1500, %v127
    %v1509 = vmul.f32 %v1503, %v127
    %v1510 = vmul.f32 %v1506, %v127
    %v1511 = vadd.f32 %v1507, 1e-12
    %v1512 = vadd.f32 %v1508, 1e-12
    %v1513 = vadd.f32 %v1509, 1e-12
    %v1514 = vadd.f32 %v1510, 1e-12
    %v1515 = vrsqrt.pop %v1511
    %v1516 = vmul.f32 %v1515, %v1511
    %v1517 = vmul.f32 %v1516, %v1515
    %v1518 = vmul.f32 0.5, %v1517
    %v1519 = vsub.f32 1.5, %v1518
    %v1520 = vmul.f32 %v1515, %v1519
    %vm1521 = vweird.f32 %v1511
    %vm1522 = vweird.f32 %v1515
    %vm1523 = vmor %vm1521, %vm1522
    %v1524 = vsel %vm1523, %v1515, %v1520
    %v1525 = vrsqrt.pop %v1512
    %v1526 = vmul.f32 %v1525, %v1512
    %v1527 = vmul.f32 %v1526, %v1525
    %v1528 = vmul.f32 0.5, %v1527
    %v1529 = vsub.f32 1.5, %v1528
    %v1530 = vmul.f32 %v1525, %v1529
    %vm1531 = vweird.f32 %v1512
    %vm1532 = vweird.f32 %v1525
    %vm1533 = vmor %vm1531, %vm1532
    %v1534 = vsel %vm1533, %v1525, %v1530
    %v1535 = vrsqrt.pop %v1513
    %v1536 = vmul.f32 %v1535, %v1513
    %v1537 = vmul.f32 %v1536, %v1535
    %v1538 = vmul.f32 0.5, %v1537
    %v1539 = vsub.f32 1.5, %v1538
    %v1540 = vmul.f32 %v1535, %v1539
    %vm1541 = vweird.f32 %v1513
    %vm1542 = vweird.f32 %v1535
    %vm1543 = vmor %vm1541, %vm1542
    %v1544 = vsel %vm1543, %v1535, %v1540
    %v1545 = vrsqrt.pop %v1514
    %v1546 = vmul.f32 %v1545, %v1514
    %v1547 = vmul.f32 %v1546, %v1545
    %v1548 = vmul.f32 0.5, %v1547
    %v1549 = vsub.f32 1.5, %v1548
    %v1550 = vmul.f32 %v1545, %v1549
    %vm1551 = vweird.f32 %v1514
    %vm1552 = vweird.f32 %v1545
    %vm1553 = vmor %vm1551, %vm1552
    %v1554 = vsel %vm1553, %v1545, %v1550
    %v1555 = vmul.f32 %v1487, %v1524
    %v1556 = vmul.f32 %v1488, %v1534
    %v1557 = vmul.f32 %v1489, %v1544
    %v1558 = vmul.f32 %v1490, %v1554
    %v1559 = vrot.slane %v1023, 1
    %v1560 = vperm.slane %v1559, 0
    %v1562 = vmul.f32 %v1555, %v1560
    %v1563 = vmul.f32 %v1556, %v1560
    %v1564 = vmul.f32 %v1557, %v1560
    %v1565 = vmul.f32 %v1558, %v1560
    %1566 = vrot.lane.b32.xlu0 %v1023, 96
    %v1567 = vpop.permute.xlu0 %1566
    %v1568 = vrot.slane %v1567, 1
    %v1569 = vperm.slane %v1568, 0
    %v1571 = vadd.f32 %v1562, %v1569
    %v1572 = vadd.f32 %v1563, %v1569
    %v1573 = vadd.f32 %v1564, %v1569
    %v1574 = vadd.f32 %v1565, %v1569
    %v1575 = vpack.c.bf16 %v1572, %v1571
    %v1576 = vpack.c.bf16 %v1574, %v1573
    %s1577 = scalar_lea.vmem [#allocation7], 16
    %v1578 = vld [vmem:[%s1577] sm:$0xf]
    %v1579 = vld [vmem:[%s1577 + $0x4] sm:$0xf]
    %v1580 = vld [vmem:[%s1577 + $0x8] sm:$0xf]
    %v1581 = vld [vmem:[%s1577 + $0xc] sm:$0xf]
    %1582 = vrot.lane.b32.xlu0 %v1023, 64
    %v1583 = vpop.permute.xlu0 %1582
    %v1584 = vrot.slane %v1583, 1
    %v1585 = vperm.slane %v1584, 0
    %v1591 = vunpack.c.l.b16 %v1578
    %v1592 = vunpack.c.l.b16 %v1579
    %v1593 = vunpack.c.l.b16 %v1580
    %v1594 = vunpack.c.l.b16 %v1581
    %v1595 = vpack.c.b16 %v1592, %v1591
    %v1596 = vpack.c.b16 %v1594, %v1593
    %v1600 = vsel %vm108, %v1575, 0
    %v1603 = vsel %vm108, %v1576, 0
    %1605 = vmatpush.bf16.msra.mxu0 0
    %1606 = vmatpush.bf16.msra.mxu0 0
    %1607 = vmatpush.bf16.msra.mxu0 0
    %1608 = vmatpush.bf16.msra.mxu0 0
    %1609 = vmatpush.bf16.msra.mxu0 0
    %1610 = vmatpush.bf16.msra.mxu0 0
    %1611 = vmatpush.bf16.msra.mxu0 %v1596
    %1612 = vmatpush.bf16.msra.mxu0 %v1595
    %1613 = vmatmul.bf16.gmra.mxu0 %v1600
    %v1614 = vpop.f32.mrf.mxu0
    %v1615 = vadd.f32 %v1585, %v1614
    %v1616 = vpop.f32.mrf.mxu0
    %v1617 = vadd.f32 %v1585, %v1616
    %1618 = vmatmul.bf16.gmra.mxu0 %v1603
    %v1619 = vpop.f32.mrf.mxu0
    %v1620 = vadd.f32 %v1585, %v1619
    %v1621 = vpop.f32.mrf.mxu0
    %v1622 = vadd.f32 %v1585, %v1621
    %1623 = vdwg.mxu0
    %v1624 = vmul.f32 %v1615, 0.5
    %v1625 = vmul.f32 %v1617, 0.5
    %v1626 = vmul.f32 %v1620, 0.5
    %v1627 = vmul.f32 %v1622, 0.5
    %v1628 = vmul.f32 %v1615, 0.044715
    %v1629 = vmul.f32 %v1617, 0.044715
    %v1630 = vmul.f32 %v1620, 0.044715
    %v1631 = vmul.f32 %v1622, 0.044715
    %v1632 = vmul.f32 %v1628, %v1615
    %v1633 = vmul.f32 %v1629, %v1617
    %v1634 = vmul.f32 %v1630, %v1620
    %v1635 = vmul.f32 %v1631, %v1622
    %v1636 = vmul.f32 %v1632, %v1615
    %v1637 = vmul.f32 %v1633, %v1617
    %v1638 = vmul.f32 %v1634, %v1620
    %v1639 = vmul.f32 %v1635, %v1622
    %v1640 = vadd.f32 %v1615, %v1636
    %v1641 = vadd.f32 %v1617, %v1637
    %v1642 = vadd.f32 %v1620, %v1638
    %v1643 = vadd.f32 %v1622, %v1639
    %v1644 = vmul.f32 %v1640, 0.7978846
    %v1645 = vmul.f32 %v1641, 0.7978846
    %v1646 = vmul.f32 %v1642, 0.7978846
    %v1647 = vmul.f32 %v1643, 0.7978846
    %v1648 = vtanh.pop %v1644
    %v1649 = vtanh.pop %v1645
    %v1650 = vtanh.pop %v1646
    %v1651 = vtanh.pop %v1647
    %v1652 = vadd.f32 %v1648, 1.0
    %v1653 = vadd.f32 %v1649, 1.0
    %v1654 = vadd.f32 %v1650, 1.0
    %v1655 = vadd.f32 %v1651, 1.0
    %v1656 = vmul.f32 %v1624, %v1652
    %v1657 = vmul.f32 %v1625, %v1653
    %v1658 = vmul.f32 %v1626, %v1654
    %v1659 = vmul.f32 %v1627, %v1655
    %v1660 = vpack.c.bf16 %v1657, %v1656
    %v1661 = vpack.c.bf16 %v1659, %v1658
    %s1662 = scalar_lea.vmem %s6, 32
    %v1663 = vld [vmem:[%s1662] sm:$0xf]
    %v1664 = vld [vmem:[%s1662 + $0x4] sm:$0xf]
    %v1665 = vld [vmem:[%s1662 + $0x8] sm:$0xf]
    %v1666 = vld [vmem:[%s1662 + $0xc] sm:$0xf]
    %v1667 = vld [vmem:[%s1662 + $0x10] sm:$0xf]
    %v1668 = vld [vmem:[%s1662 + $0x14] sm:$0xf]
    %v1669 = vld [vmem:[%s1662 + $0x18] sm:$0xf]
    %v1670 = vld [vmem:[%s1662 + $0x1c] sm:$0xf]
    %v1671 = vrot.slane %v1023, 2
    %v1672 = vperm.slane %v1671, 0
    %v1682 = vunpack.c.l.b16 %v1663
    %v1683 = vunpack.c.l.b16 %v1664
    %v1684 = vunpack.c.l.b16 %v1665
    %v1685 = vunpack.c.l.b16 %v1666
    %v1686 = vunpack.c.l.b16 %v1667
    %v1687 = vunpack.c.l.b16 %v1668
    %v1688 = vunpack.c.l.b16 %v1669
    %v1689 = vunpack.c.l.b16 %v1670
    %v1690 = vpack.c.b16 %v1683, %v1682
    %v1691 = vpack.c.b16 %v1685, %v1684
    %v1692 = vpack.c.b16 %v1687, %v1686
    %v1693 = vpack.c.b16 %v1689, %v1688
    %v1699 = vsel %vm890, %v1660, 0
    %v1702 = vsel %vm890, %v1661, 0
    %1704 = vmatpush.bf16.msra.mxu0 0
    %1705 = vmatpush.bf16.msra.mxu0 0
    %1706 = vmatpush.bf16.msra.mxu0 0
    %1707 = vmatpush.bf16.msra.mxu0 0
    %1708 = vmatpush.bf16.msra.mxu0 %v1693
    %1709 = vmatpush.bf16.msra.mxu0 %v1692
    %1710 = vmatpush.bf16.msra.mxu0 %v1691
    %1711 = vmatpush.bf16.msra.mxu0 %v1690
    %1712 = vmatmul.bf16.gmra.mxu0 %v1699
    %v1713 = vpop.f32.mrf.mxu0
    %v1714 = vadd.f32 %v1672, %v1713
    %v1715 = vpop.f32.mrf.mxu0
    %v1716 = vadd.f32 %v1672, %v1715
    %1717 = vmatmul.bf16.gmra.mxu0 %v1702
    %v1718 = vpop.f32.mrf.mxu0
    %v1719 = vadd.f32 %v1672, %v1718
    %v1720 = vpop.f32.mrf.mxu0
    %v1721 = vadd.f32 %v1672, %v1720
    %1722 = vdwg.mxu0
    %v1723 = vadd.f32 %v1571, %v1714
    %v1724 = vadd.f32 %v1572, %v1716
    %v1725 = vadd.f32 %v1573, %v1719
    %v1726 = vadd.f32 %v1574, %v1721
    %v1727 = vsel %vm108, %v1723, 0.0
    %1728 = vadd.xlane.f32.xlu0 %v1727
    %v1729 = vpop.xlane.xlu0 %1728
    %v1730 = vsel %vm108, %v1724, 0.0
    %1731 = vadd.xlane.f32.xlu0 %v1730
    %v1732 = vpop.xlane.xlu0 %1731
    %v1733 = vsel %vm108, %v1725, 0.0
    %1734 = vadd.xlane.f32.xlu0 %v1733
    %v1735 = vpop.xlane.xlu0 %1734
    %v1736 = vsel %vm108, %v1726, 0.0
    %1737 = vadd.xlane.f32.xlu0 %v1736
    %v1738 = vpop.xlane.xlu0 %1737
    %v1739 = vmul.f32 %v1729, %v127
    %v1740 = vmul.f32 %v1732, %v127
    %v1741 = vmul.f32 %v1735, %v127
    %v1742 = vmul.f32 %v1738, %v127
    %v1743 = vsub.f32 %v1723, %v1739
    %v1744 = vsub.f32 %v1724, %v1740
    %v1745 = vsub.f32 %v1725, %v1741
    %v1746 = vsub.f32 %v1726, %v1742
    %v1747 = vmul.f32 %v1743, %v1743
    %v1748 = vmul.f32 %v1744, %v1744
    %v1749 = vmul.f32 %v1745, %v1745
    %v1750 = vmul.f32 %v1746, %v1746
    %v1751 = vsel %vm108, %v1747, 0.0
    %1752 = vadd.xlane.f32.xlu0 %v1751
    %v1753 = vpop.xlane.xlu0 %1752
    %v1754 = vsel %vm108, %v1748, 0.0
    %1755 = vadd.xlane.f32.xlu0 %v1754
    %v1756 = vpop.xlane.xlu0 %1755
    %v1757 = vsel %vm108, %v1749, 0.0
    %1758 = vadd.xlane.f32.xlu0 %v1757
    %v1759 = vpop.xlane.xlu0 %1758
    %v1760 = vsel %vm108, %v1750, 0.0
    %1761 = vadd.xlane.f32.xlu0 %v1760
    %v1762 = vpop.xlane.xlu0 %1761
    %v1763 = vmul.f32 %v1753, %v127
    %v1764 = vmul.f32 %v1756, %v127
    %v1765 = vmul.f32 %v1759, %v127
    %v1766 = vmul.f32 %v1762, %v127
    %v1767 = vadd.f32 %v1763, 1e-12
    %v1768 = vadd.f32 %v1764, 1e-12
    %v1769 = vadd.f32 %v1765, 1e-12
    %v1770 = vadd.f32 %v1766, 1e-12
    %v1771 = vrsqrt.pop %v1767
    %v1772 = vmul.f32 %v1771, %v1767
    %v1773 = vmul.f32 %v1772, %v1771
    %v1774 = vmul.f32 0.5, %v1773
    %v1775 = vsub.f32 1.5, %v1774
    %v1776 = vmul.f32 %v1771, %v1775
    %vm1777 = vweird.f32 %v1767
    %vm1778 = vweird.f32 %v1771
    %vm1779 = vmor %vm1777, %vm1778
    %v1780 = vsel %vm1779, %v1771, %v1776
    %v1781 = vrsqrt.pop %v1768
    %v1782 = vmul.f32 %v1781, %v1768
    %v1783 = vmul.f32 %v1782, %v1781
    %v1784 = vmul.f32 0.5, %v1783
    %v1785 = vsub.f32 1.5, %v1784
    %v1786 = vmul.f32 %v1781, %v1785
    %vm1787 = vweird.f32 %v1768
    %vm1788 = vweird.f32 %v1781
    %vm1789 = vmor %vm1787, %vm1788
    %v1790 = vsel %vm1789, %v1781, %v1786
    %v1791 = vrsqrt.pop %v1769
    %v1792 = vmul.f32 %v1791, %v1769
    %v1793 = vmul.f32 %v1792, %v1791
    %v1794 = vmul.f32 0.5, %v1793
    %v1795 = vsub.f32 1.5, %v1794
    %v1796 = vmul.f32 %v1791, %v1795
    %vm1797 = vweird.f32 %v1769
    %vm1798 = vweird.f32 %v1791
    %vm1799 = vmor %vm1797, %vm1798
    %v1800 = vsel %vm1799, %v1791, %v1796
    %v1801 = vrsqrt.pop %v1770
    %v1802 = vmul.f32 %v1801, %v1770
    %v1803 = vmul.f32 %v1802, %v1801
    %v1804 = vmul.f32 0.5, %v1803
    %v1805 = vsub.f32 1.5, %v1804
    %v1806 = vmul.f32 %v1801, %v1805
    %vm1807 = vweird.f32 %v1770
    %vm1808 = vweird.f32 %v1801
    %vm1809 = vmor %vm1807, %vm1808
    %v1810 = vsel %vm1809, %v1801, %v1806
    %v1811 = vmul.f32 %v1743, %v1780
    %v1812 = vmul.f32 %v1744, %v1790
    %v1813 = vmul.f32 %v1745, %v1800
    %v1814 = vmul.f32 %v1746, %v1810
    %v1815 = vrot.slane %v1567, 2
    %v1816 = vperm.slane %v1815, 0
    %v1818 = vmul.f32 %v1811, %v1816
    %v1819 = vmul.f32 %v1812, %v1816
    %v1820 = vmul.f32 %v1813, %v1816
    %v1821 = vmul.f32 %v1814, %v1816
    %v1822 = vrot.slane %v1583, 2
    %v1823 = vperm.slane %v1822, 0
    %v1825 = vadd.f32 %v1818, %v1823
    %v1826 = vadd.f32 %v1819, %v1823
    %v1827 = vadd.f32 %v1820, %v1823
    %v1828 = vadd.f32 %v1821, %v1823
    %v1830 = vrot.slane %v214, 1
    %v1831 = vsel %vm278, %v1830, 0
    %1833 = vmatpush.msra.mxu0 0.0
    %1834 = vmatpush.msra.mxu0 0.0
    %1835 = vmatpush.msra.mxu0 0.0
    %1836 = vmatpush.msra.mxu0 0.0
    %1837 = vmatpush.msra.mxu0 0.0
    %1838 = vmatpush.msra.mxu0 0.0
    %1839 = vmatpush.msra.mxu0 0.0
    %1840 = vmatpush.msra.mxu0 0.0
    %1841 = vmatpush.msra.mxu0 0.0
    %1842 = vmatpush.msra.mxu0 0.0
    %1843 = vmatpush.msra.mxu0 0.0
    %1844 = vmatpush.msra.mxu0 0.0
    %1845 = vmatpush.msra.mxu0 0.0
    %1846 = vmatpush.msra.mxu0 0.0
    %1847 = vmatpush.msra.mxu0 %v1826
    %1848 = vmatpush.msra.mxu0 %v1825
    %1849 = vmatmul.f32.gmra.mxu0 %v1831
    %v1850 = vpop.f32.mrf.mxu0
    %v1851 = vadd.f32 0.0, %v1850
    %1852 = vdwg.mxu0
    %v1854 = vrot.slane %v215, 1
    %v1855 = vsel %vm278, %v1854, 0
    %1857 = vmatpush.msra.mxu0 0.0
    %1858 = vmatpush.msra.mxu0 0.0
    %1859 = vmatpush.msra.mxu0 0.0
    %1860 = vmatpush.msra.mxu0 0.0
    %1861 = vmatpush.msra.mxu0 0.0
    %1862 = vmatpush.msra.mxu0 0.0
    %1863 = vmatpush.msra.mxu0 0.0
    %1864 = vmatpush.msra.mxu0 0.0
    %1865 = vmatpush.msra.mxu0 0.0
    %1866 = vmatpush.msra.mxu0 0.0
    %1867 = vmatpush.msra.mxu0 0.0
    %1868 = vmatpush.msra.mxu0 0.0
    %1869 = vmatpush.msra.mxu0 0.0
    %1870 = vmatpush.msra.mxu0 0.0
    %1871 = vmatpush.msra.mxu0 %v1828
    %1872 = vmatpush.msra.mxu0 %v1827
    %1873 = vmatmul.f32.gmra.mxu0 %v1855
    %v1874 = vpop.f32.mrf.mxu0
    %v1875 = vadd.f32 0.0, %v1874
    %1876 = vdwg.mxu0
    %v1879 = vrot.slane %v1875, 7
    %vm1880 = vcmask 1041409
    %v1881 = vsel %vm1880, %v1879, %v1851
    %vm1883 = vcmask 254976
    %1884 = vst.msk [vmem:[#allocation10] sm:$0x3] %vm1883, %v1881
    // Predicated region
    $region50: #{tpu_custom_call.1} parent=1 // pred_check
      _
    $region51: #{tpu_custom_call.1} parent=1 // pred_check_branch
      %1886 = sbr.rel (0) target = $region53
    $region52: #{tpu_custom_call.1} parent=1 // pred_region
      %1888 = vsyncadd [#allocation4], 0
      %s1890 = sshll.u32 [#allocation10], 4
      %s1891 = int_to_ptr.vmem [resolvable:$true] %s1890
      %s1892 = sshll.u32 %s8, 4
      %s1893 = int_to_ptr.hbm [resolvable:$true] %s1892
      %1895 = dma.vmem_to_hbm [thread:$0]  %s1891, 32, %s1893, [#allocation4]
    $region53: #{tpu_custom_call.1} parent=1 // pred_fallthru
      _
    // Predicated region
    $region54: #{tpu_custom_call.1} parent=1 // pred_check
      _
    $region55: #{tpu_custom_call.1} parent=1 // pred_check_branch
      %1897 = sbr.rel (0) target = $region57
    $region56: #{tpu_custom_call.1} parent=1 // pred_region
      %1899 = dma.done [#allocation4], 32
    $region57: #{tpu_custom_call.1} parent=1 // pred_fallthru
      _
    %1900 = vsyncpa [#allocation3], 1
    %1901 = vsyncpa [#allocation6], 1
    %1902 = vsyncpa [#allocation9], 1
    %1903 = vsyncpa [#allocation4], 1

</llo_original>
